<compile_context>
chip_gen: v5e
topology: v5e:2x2
jax: 0.10.0
libtpu: 0.0.40
codegen_flags: <defaults>
</compile_context>

<pallas_src>
import functools

import jax
import jax.numpy as jnp
from jax import lax
from jax.experimental import pallas as pl
from jax.experimental.pallas import tpu as pltpu

K = 7                      # conv kernel size
PAD = (K - 1) // 2         # 'same' padding = 3


def spatial_gate_kernel(params_ref, x_ref, out_ref, *, H, W, CC):
    # params_ref: SMEM f32[2*K*K + 1]   folded conv weights + folded BN bias
    # x_ref/out_ref: VMEM (Bt, C, H*W)  Bt images per grid step, lane-dense layout
    Bt, C, HW = x_ref.shape
    f32 = jnp.float32

    n_full = C // CC
    rem = C - n_full * CC
    unroll = max(1, min(n_full, 4))

    # ---- image-independent stencil helpers, computed once per block ----
    lane = lax.broadcasted_iota(jnp.int32, (1, HW), 1)
    if W & (W - 1) == 0:
        col = lane & (W - 1)                      # power-of-two fast path
    else:
        col = lax.rem(lane, jnp.int32(W))
    row_mask = {}                                 # 0 <= row + dh < H (flat-index form)
    col_mask = {}                                 # 0 <= col + dw < W
    for d in range(-PAD, PAD + 1):
        if d == 0:
            continue
        row_mask[d] = (lane < (H - d) * W) if d > 0 else (lane >= (-d) * W)
        col_mask[d] = (col < (W - d)) if d > 0 else (col >= (-d))

    def per_image(b, carry):
        # ------------- Z-pool: channel max + channel sum, C-chunked -------------
        # (CC, HW) elementwise accumulators (VPU); one sublane reduction at the end.
        def pool_body(i, acc):
            mx, sm = acc
            c0 = pl.multiple_of(i * CC, CC)
            xc = x_ref[b, pl.ds(c0, CC), :].astype(f32)
            return jnp.maximum(mx, xc), sm + xc

        xc0 = x_ref[b, pl.ds(0, CC), :].astype(f32)
        mx, sm = lax.fori_loop(1, n_full, pool_body, (xc0, xc0), unroll=unroll)
        zmax = jnp.max(mx, axis=0, keepdims=True)
        zsum = jnp.sum(sm, axis=0, keepdims=True)
        if rem:
            xr = x_ref[b, pl.ds(n_full * CC, rem), :].astype(f32)
            zmax = jnp.maximum(zmax, jnp.max(xr, axis=0, keepdims=True))
            zsum = zsum + jnp.sum(xr, axis=0, keepdims=True)
        # "2-channel" compressed map: [channel max, channel sum]; the 1/C of the
        # mean is folded into the second set of conv weights on the host.
        zs = (zmax, zsum)

        # ------------- 7x7 'same' conv on the flat (1, HW) gate map -------------
        # Seven running T[dw] accumulators; one (c, dh) row-shifted map live at a
        # time (14 row rolls on the XLU, 98 scalar-weight VPU MACs), then 6 column
        # rolls + edge masks finish the 2D stencil.  Live set ~10 (1, HW) maps.
        T = [jnp.zeros((1, HW), f32) for _ in range(K)]
        for c in range(2):
            for dh in range(-PAD, PAD + 1):
                if dh == 0:
                    s = zs[c]
                else:
                    s = jnp.where(row_mask[dh],
                                  pltpu.roll(zs[c], (-dh * W) % HW, axis=1), 0.0)
                for dw in range(-PAD, PAD + 1):
                    wgt = params_ref[c * K * K + (dh + PAD) * K + (dw + PAD)]
                    T[dw + PAD] = T[dw + PAD] + wgt * s
        y = T[PAD]                                            # dw == 0 term
        for dw in range(-PAD, PAD + 1):
            if dw == 0:
                continue
            y = y + jnp.where(col_mask[dw],
                              pltpu.roll(T[dw + PAD], (-dw) % HW, axis=1), 0.0)

        gate = jax.nn.sigmoid(y + params_ref[2 * K * K])      # (1, HW), f32
        gate_b = jnp.broadcast_to(gate, (CC, HW))             # hoisted broadcast

        # ------------- out = x * sigmoid(y), streamed in C-chunks -------------
        def mul_body(i, acc):
            c0 = pl.multiple_of(i * CC, CC)
            xc = x_ref[b, pl.ds(c0, CC), :]
            out_ref[b, pl.ds(c0, CC), :] = (xc.astype(f32) * gate_b).astype(out_ref.dtype)
            return acc

        lax.fori_loop(0, n_full, mul_body, 0, unroll=unroll)
        if rem:
            xr = x_ref[b, pl.ds(n_full * CC, rem), :]
            out_ref[b, pl.ds(n_full * CC, rem), :] = (
                xr.astype(f32) * jnp.broadcast_to(gate, (rem, HW))).astype(out_ref.dtype)
        return carry

    lax.fori_loop(0, Bt, per_image, 0)


def _largest_divisor_leq(n, k):
    k = int(max(1, min(n, k)))
    while n % k:
        k -= 1
    return k


def _pick_cc(C, HW):
    # Channel chunk of the streamed (C, HW) slab: multiple of 8 sublanes, capped so
    # the two (CC, HW) f32 pool accumulators stay within ~half the 256 KiB vreg file.
    cap = max(8, ((32 << 10) // max(HW * 4, 1)) // 8 * 8)
    return int(min(C, min(32, cap)))


def spatial_gate(x, conv_w, bn_gamma=1.0, bn_beta=0.0, bn_mean=0.0, bn_var=1.0,
                 bn_eps=1e-5, stream_dtype=None):
    """SpatialGate forward.  x: (B, C, H, W); conv_w: (1, 2, 7, 7) Conv2d weight.

    stream_dtype: optional narrower dtype (e.g. jnp.bfloat16) to stream x/out through
    HBM with (kernel math stays f32).  None keeps exact input-dtype parity.
    """
    B, C, H, W = x.shape
    HW = H * W
    out_dtype = x.dtype

    # Fold eval-mode BatchNorm and the Z-pool mean's 1/C into conv weights/bias.
    bn_scale = bn_gamma / jnp.sqrt(bn_var + bn_eps)
    w = (jnp.reshape(conv_w, (2, K, K)) * bn_scale).astype(jnp.float32)
    w = w.at[1].multiply(1.0 / C)                 # mean channel -> plain channel sum
    bias = jnp.reshape(bn_beta - bn_mean * bn_scale, (1,)).astype(jnp.float32)
    params = jnp.concatenate([w.reshape(-1), bias])            # (2*K*K + 1,)

    xf = x.reshape(B, C, HW)                      # lane-dense view of the C stream
    if stream_dtype is not None:
        xf = xf.astype(stream_dtype)
    store_dtype = xf.dtype
    # TODO(synk): if HW % 128 != 0, pad W (or switch to an (H, W)-tiled stencil) so
    # the streamed last dim stays lane-dense; only lane-aligned HW is exercised here.

    # Generation-aware VMEM budget: never request more than ~3/4 of physical VMEM
    # (v7x: 64 MiB/TC -> 48 MiB cap; v5e/v6e: 128 MiB -> 96 MiB cap).
    try:
        phys_vmem = int(pltpu.get_tpu_info().vmem_capacity_bytes)
    except Exception:
        phys_vmem = 64 << 20                      # conservative (v7x) fallback
    vmem_cap = (phys_vmem * 3) // 4

    # Batch Bt images per grid step: big enough blocks to amortize per-step overhead
    # and hit the HBM roofline, small enough that 2x(in+out) double-buffered blocks
    # stay under the VMEM cap.  Bt divides B exactly.
    img_bytes = C * HW * jnp.dtype(store_dtype).itemsize
    blk_budget = max((vmem_cap - (2 << 20)) // 4, 1 << 20)
    Bt = _largest_divisor_leq(B, max(1, blk_budget // max(img_bytes, 1)))
    blk_bytes = Bt * img_bytes
    # TODO(synk): if a single image exceeds blk_budget (very large C*H*W), add an
    # H-tile grid axis with a 3-row halo (or a gate-map pass + C-tiled multiply
    # pass) instead of relying on the clamp below.
    vmem_limit = int(min(max(4 * blk_bytes + (2 << 20), 16 << 20), vmem_cap))

    CC = _pick_cc(C, HW)

    out = pl.pallas_call(
        functools.partial(spatial_gate_kernel, H=H, W=W, CC=CC),
        out_shape=jax.ShapeDtypeStruct((B, C, HW), store_dtype),
        grid_spec=pltpu.PrefetchScalarGridSpec(
            num_scalar_prefetch=0,
            grid=(B // Bt,),
            in_specs=[
                pl.BlockSpec(memory_space=pltpu.MemorySpace.SMEM),      # params
                pl.BlockSpec((Bt, C, HW), lambda i: (i, 0, 0)),         # x block
            ],
            out_specs=pl.BlockSpec((Bt, C, HW), lambda i: (i, 0, 0)),
        ),
        compiler_params=pltpu.CompilerParams(
            dimension_semantics=("parallel",),
            vmem_limit_bytes=vmem_limit,
        ),
    )(params, xf)

    out = out.reshape(B, C, H, W)
    if stream_dtype is not None:
        out = out.astype(out_dtype)
    return out


if __name__ == "__main__":
    key = jax.random.PRNGKey(0)
    kx, kw = jax.random.split(key)

    B, C, H, W = 2, 4, 16, 16
    x = jax.random.normal(kx, (B, C, H, W), dtype=jnp.float32)

    # Conv2d(2, 1, kernel_size=7, bias=False) weight, deterministic init
    conv_w = 0.1 * jax.random.normal(kw, (1, 2, K, K), dtype=jnp.float32)

    # Eval-mode BatchNorm2d(1) with default parameters
    gamma, beta, r_mean, r_var, eps = 1.0, 0.0, 0.0, 1.0, 1e-5

    out = jax.block_until_ready(
        spatial_gate(x, conv_w, gamma, beta, r_mean, r_var, eps))

    # Pure-JAX reference for sanity
    comp = jnp.stack([x.max(axis=1), x.mean(axis=1)], axis=1)     # (B, 2, H, W)
    conv = jax.lax.conv_general_dilated(
        comp, conv_w, window_strides=(1, 1),
        padding=[(PAD, PAD), (PAD, PAD)],
        dimension_numbers=("NCHW", "OIHW", "NCHW"))
    bn_scale = gamma / jnp.sqrt(jnp.float32(r_var + eps))
    bn_bias = beta - r_mean * bn_scale
    ref = x * jax.nn.sigmoid(conv * bn_scale + bn_bias)

    assert out.shape == x.shape and out.dtype == x.dtype
    assert jnp.allclose(out, ref, atol=1e-4, rtol=1e-4), "mismatch vs reference"

    print("KERNEL_OK")
</pallas_src>

<mosaic_0001>
module attributes {stable_mosaic.version = 11 : i64} {
  func.func @spatial_gate_kernel(%arg0: i32, %arg1: memref<99xf32, #tpu.memory_space<smem>>, %arg2: memref<2x4x256xf32, #tpu.memory_space<vmem>>, %arg3: memref<2x4x256xf32, #tpu.memory_space<vmem>>) attributes {dimension_semantics = [#tpu.dimension_semantics<parallel>], iteration_bounds = array<i64: 1>, scalar_prefetch = 0 : i64, scratch_operands = 0 : i64, tpu.core_type = #tpu.core_type<tc>, window_params = [{transform_indices = @transform_0, window_bounds = array<i64: 99>}, {transform_indices = @transform_1, window_bounds = array<i64: 2, 4, 256>}, {transform_indices = @transform_2, window_bounds = array<i64: 2, 4, 256>}]} {
    %0 = tpu.iota {dimensions = array<i32: 1>} : vector<1x256xi32>
    %c15_i32 = arith.constant 15 : i32
    %1 = vector.broadcast %c15_i32 : i32 to vector<1x256xi32>
    %2 = arith.andi %0, %1 : vector<1x256xi32>
    %c48_i32 = arith.constant 48 : i32
    %3 = vector.broadcast %c48_i32 : i32 to vector<1x256xi32>
    %4 = arith.cmpi sge, %0, %3 : vector<1x256xi32>
    %c3_i32 = arith.constant 3 : i32
    %5 = vector.broadcast %c3_i32 : i32 to vector<1x256xi32>
    %6 = arith.cmpi sge, %2, %5 : vector<1x256xi32>
    %c32_i32 = arith.constant 32 : i32
    %7 = vector.broadcast %c32_i32 : i32 to vector<1x256xi32>
    %8 = arith.cmpi sge, %0, %7 : vector<1x256xi32>
    %c2_i32 = arith.constant 2 : i32
    %9 = vector.broadcast %c2_i32 : i32 to vector<1x256xi32>
    %10 = arith.cmpi sge, %2, %9 : vector<1x256xi32>
    %c16_i32 = arith.constant 16 : i32
    %11 = vector.broadcast %c16_i32 : i32 to vector<1x256xi32>
    %12 = arith.cmpi sge, %0, %11 : vector<1x256xi32>
    %c1_i32 = arith.constant 1 : i32
    %13 = vector.broadcast %c1_i32 : i32 to vector<1x256xi32>
    %14 = arith.cmpi sge, %2, %13 : vector<1x256xi32>
    %c240_i32 = arith.constant 240 : i32
    %15 = vector.broadcast %c240_i32 : i32 to vector<1x256xi32>
    %16 = arith.cmpi slt, %0, %15 : vector<1x256xi32>
    %c15_i32_0 = arith.constant 15 : i32
    %17 = vector.broadcast %c15_i32_0 : i32 to vector<1x256xi32>
    %18 = arith.cmpi slt, %2, %17 : vector<1x256xi32>
    %c224_i32 = arith.constant 224 : i32
    %19 = vector.broadcast %c224_i32 : i32 to vector<1x256xi32>
    %20 = arith.cmpi slt, %0, %19 : vector<1x256xi32>
    %c14_i32 = arith.constant 14 : i32
    %21 = vector.broadcast %c14_i32 : i32 to vector<1x256xi32>
    %22 = arith.cmpi slt, %2, %21 : vector<1x256xi32>
    %c208_i32 = arith.constant 208 : i32
    %23 = vector.broadcast %c208_i32 : i32 to vector<1x256xi32>
    %24 = arith.cmpi slt, %0, %23 : vector<1x256xi32>
    %c13_i32 = arith.constant 13 : i32
    %25 = vector.broadcast %c13_i32 : i32 to vector<1x256xi32>
    %26 = arith.cmpi slt, %2, %25 : vector<1x256xi32>
    %c0_i32 = arith.constant 0 : i32
    %c2_i32_1 = arith.constant 2 : i32
    %27 = arith.addi %c0_i32, %c2_i32_1 : i32
    %c1_i32_2 = arith.constant 1 : i32
    scf.for %arg4 = %c0_i32 to %27 step %c1_i32_2  : i32 {
      %28 = arith.index_cast %arg4 : i32 to index
      %c0 = arith.constant 0 : index
      %c0_4 = arith.constant 0 : index
      %29 = vector.load %arg2[%28, %c0, %c0_4] : memref<2x4x256xf32, #tpu.memory_space<vmem>>, vector<1x4x256xf32>
      %30 = vector.shape_cast %29 : vector<1x4x256xf32> to vector<4x256xf32>
      %c1_i32_5 = arith.constant 1 : i32
      %c0_i32_6 = arith.constant 0 : i32
      %31 = arith.addi %c1_i32_5, %c0_i32_6 : i32
      %c1_i32_7 = arith.constant 1 : i32
      %32:2 = scf.for %arg5 = %c1_i32_5 to %31 step %c1_i32_7 iter_args(%arg6 = %30, %arg7 = %30) -> (vector<4x256xf32>, vector<4x256xf32>)  : i32 {
        %c4_i32_56 = arith.constant 4 : i32
        %518 = arith.muli %arg5, %c4_i32_56 : i32
        %519 = tpu.assume_multiple %518, 4 : i32
        %520 = arith.index_cast %arg4 : i32 to index
        %521 = arith.index_cast %519 : i32 to index
        %c0_57 = arith.constant 0 : index
        %522 = vector.load %arg2[%520, %521, %c0_57] : memref<2x4x256xf32, #tpu.memory_space<vmem>>, vector<1x4x256xf32>
        %523 = vector.shape_cast %522 : vector<1x4x256xf32> to vector<4x256xf32>
        %524 = arith.maximumf %arg6, %523 : vector<4x256xf32>
        %525 = arith.addf %arg7, %523 : vector<4x256xf32>
        scf.yield %524, %525 : vector<4x256xf32>, vector<4x256xf32>
      }
      %c0_i32_8 = arith.constant 0 : i32
      %cst = arith.constant dense<0xFF800000> : vector<256xf32>
      %33 = vector.multi_reduction <maximumf>, %32#0, %cst [0] : vector<4x256xf32> to vector<256xf32>
      %34 = vector.shape_cast %33 : vector<256xf32> to vector<1x256xf32>
      %cst_9 = arith.constant dense<0.000000e+00> : vector<256xf32>
      %35 = vector.multi_reduction <add>, %32#1, %cst_9 [0] : vector<4x256xf32> to vector<256xf32>
      %36 = vector.shape_cast %35 : vector<256xf32> to vector<1x256xf32>
      %cst_10 = arith.constant 0.000000e+00 : f32
      %37 = vector.broadcast %cst_10 : f32 to vector<1x256xf32>
      %cst_11 = arith.constant 0.000000e+00 : f32
      %38 = vector.broadcast %cst_11 : f32 to vector<1x256xf32>
      %cst_12 = arith.constant 0.000000e+00 : f32
      %39 = vector.broadcast %cst_12 : f32 to vector<1x256xf32>
      %cst_13 = arith.constant 0.000000e+00 : f32
      %40 = vector.broadcast %cst_13 : f32 to vector<1x256xf32>
      %cst_14 = arith.constant 0.000000e+00 : f32
      %41 = vector.broadcast %cst_14 : f32 to vector<1x256xf32>
      %cst_15 = arith.constant 0.000000e+00 : f32
      %42 = vector.broadcast %cst_15 : f32 to vector<1x256xf32>
      %cst_16 = arith.constant 0.000000e+00 : f32
      %43 = vector.broadcast %cst_16 : f32 to vector<1x256xf32>
      %c48_i32_17 = arith.constant 48 : i32
      %44 = tpu.dynamic_rotate %34 by %c48_i32_17 dim 1 : vector<1x256xf32>, i32 -> vector<1x256xf32>
      %cst_18 = arith.constant 0.000000e+00 : f32
      %45 = vector.broadcast %cst_18 : f32 to vector<1x256xf32>
      %46 = arith.select %4, %44, %45 : vector<1x256xi1>, vector<1x256xf32>
      %c0_19 = arith.constant 0 : index
      %47 = memref.load %arg1[%c0_19] : memref<99xf32, #tpu.memory_space<smem>>
      %48 = vector.broadcast %47 : f32 to vector<1x256xf32>
      %49 = arith.mulf %48, %46 : vector<1x256xf32>
      %50 = arith.addf %37, %49 : vector<1x256xf32>
      %c1 = arith.constant 1 : index
      %51 = memref.load %arg1[%c1] : memref<99xf32, #tpu.memory_space<smem>>
      %52 = vector.broadcast %51 : f32 to vector<1x256xf32>
      %53 = arith.mulf %52, %46 : vector<1x256xf32>
      %54 = arith.addf %38, %53 : vector<1x256xf32>
      %c2 = arith.constant 2 : index
      %55 = memref.load %arg1[%c2] : memref<99xf32, #tpu.memory_space<smem>>
      %56 = vector.broadcast %55 : f32 to vector<1x256xf32>
      %57 = arith.mulf %56, %46 : vector<1x256xf32>
      %58 = arith.addf %39, %57 : vector<1x256xf32>
      %c3 = arith.constant 3 : index
      %59 = memref.load %arg1[%c3] : memref<99xf32, #tpu.memory_space<smem>>
      %60 = vector.broadcast %59 : f32 to vector<1x256xf32>
      %61 = arith.mulf %60, %46 : vector<1x256xf32>
      %62 = arith.addf %40, %61 : vector<1x256xf32>
      %c4 = arith.constant 4 : index
      %63 = memref.load %arg1[%c4] : memref<99xf32, #tpu.memory_space<smem>>
      %64 = vector.broadcast %63 : f32 to vector<1x256xf32>
      %65 = arith.mulf %64, %46 : vector<1x256xf32>
      %66 = arith.addf %41, %65 : vector<1x256xf32>
      %c5 = arith.constant 5 : index
      %67 = memref.load %arg1[%c5] : memref<99xf32, #tpu.memory_space<smem>>
      %68 = vector.broadcast %67 : f32 to vector<1x256xf32>
      %69 = arith.mulf %68, %46 : vector<1x256xf32>
      %70 = arith.addf %42, %69 : vector<1x256xf32>
      %c6 = arith.constant 6 : index
      %71 = memref.load %arg1[%c6] : memref<99xf32, #tpu.memory_space<smem>>
      %72 = vector.broadcast %71 : f32 to vector<1x256xf32>
      %73 = arith.mulf %72, %46 : vector<1x256xf32>
      %74 = arith.addf %43, %73 : vector<1x256xf32>
      %c32_i32_20 = arith.constant 32 : i32
      %75 = tpu.dynamic_rotate %34 by %c32_i32_20 dim 1 : vector<1x256xf32>, i32 -> vector<1x256xf32>
      %cst_21 = arith.constant 0.000000e+00 : f32
      %76 = vector.broadcast %cst_21 : f32 to vector<1x256xf32>
      %77 = arith.select %8, %75, %76 : vector<1x256xi1>, vector<1x256xf32>
      %c7 = arith.constant 7 : index
      %78 = memref.load %arg1[%c7] : memref<99xf32, #tpu.memory_space<smem>>
      %79 = vector.broadcast %78 : f32 to vector<1x256xf32>
      %80 = arith.mulf %79, %77 : vector<1x256xf32>
      %81 = arith.addf %50, %80 : vector<1x256xf32>
      %c8 = arith.constant 8 : index
      %82 = memref.load %arg1[%c8] : memref<99xf32, #tpu.memory_space<smem>>
      %83 = vector.broadcast %82 : f32 to vector<1x256xf32>
      %84 = arith.mulf %83, %77 : vector<1x256xf32>
      %85 = arith.addf %54, %84 : vector<1x256xf32>
      %c9 = arith.constant 9 : index
      %86 = memref.load %arg1[%c9] : memref<99xf32, #tpu.memory_space<smem>>
      %87 = vector.broadcast %86 : f32 to vector<1x256xf32>
      %88 = arith.mulf %87, %77 : vector<1x256xf32>
      %89 = arith.addf %58, %88 : vector<1x256xf32>
      %c10 = arith.constant 10 : index
      %90 = memref.load %arg1[%c10] : memref<99xf32, #tpu.memory_space<smem>>
      %91 = vector.broadcast %90 : f32 to vector<1x256xf32>
      %92 = arith.mulf %91, %77 : vector<1x256xf32>
      %93 = arith.addf %62, %92 : vector<1x256xf32>
      %c11 = arith.constant 11 : index
      %94 = memref.load %arg1[%c11] : memref<99xf32, #tpu.memory_space<smem>>
      %95 = vector.broadcast %94 : f32 to vector<1x256xf32>
      %96 = arith.mulf %95, %77 : vector<1x256xf32>
      %97 = arith.addf %66, %96 : vector<1x256xf32>
      %c12 = arith.constant 12 : index
      %98 = memref.load %arg1[%c12] : memref<99xf32, #tpu.memory_space<smem>>
      %99 = vector.broadcast %98 : f32 to vector<1x256xf32>
      %100 = arith.mulf %99, %77 : vector<1x256xf32>
      %101 = arith.addf %70, %100 : vector<1x256xf32>
      %c13 = arith.constant 13 : index
      %102 = memref.load %arg1[%c13] : memref<99xf32, #tpu.memory_space<smem>>
      %103 = vector.broadcast %102 : f32 to vector<1x256xf32>
      %104 = arith.mulf %103, %77 : vector<1x256xf32>
      %105 = arith.addf %74, %104 : vector<1x256xf32>
      %c16_i32_22 = arith.constant 16 : i32
      %106 = tpu.dynamic_rotate %34 by %c16_i32_22 dim 1 : vector<1x256xf32>, i32 -> vector<1x256xf32>
      %cst_23 = arith.constant 0.000000e+00 : f32
      %107 = vector.broadcast %cst_23 : f32 to vector<1x256xf32>
      %108 = arith.select %12, %106, %107 : vector<1x256xi1>, vector<1x256xf32>
      %c14 = arith.constant 14 : index
      %109 = memref.load %arg1[%c14] : memref<99xf32, #tpu.memory_space<smem>>
      %110 = vector.broadcast %109 : f32 to vector<1x256xf32>
      %111 = arith.mulf %110, %108 : vector<1x256xf32>
      %112 = arith.addf %81, %111 : vector<1x256xf32>
      %c15 = arith.constant 15 : index
      %113 = memref.load %arg1[%c15] : memref<99xf32, #tpu.memory_space<smem>>
      %114 = vector.broadcast %113 : f32 to vector<1x256xf32>
      %115 = arith.mulf %114, %108 : vector<1x256xf32>
      %116 = arith.addf %85, %115 : vector<1x256xf32>
      %c16 = arith.constant 16 : index
      %117 = memref.load %arg1[%c16] : memref<99xf32, #tpu.memory_space<smem>>
      %118 = vector.broadcast %117 : f32 to vector<1x256xf32>
      %119 = arith.mulf %118, %108 : vector<1x256xf32>
      %120 = arith.addf %89, %119 : vector<1x256xf32>
      %c17 = arith.constant 17 : index
      %121 = memref.load %arg1[%c17] : memref<99xf32, #tpu.memory_space<smem>>
      %122 = vector.broadcast %121 : f32 to vector<1x256xf32>
      %123 = arith.mulf %122, %108 : vector<1x256xf32>
      %124 = arith.addf %93, %123 : vector<1x256xf32>
      %c18 = arith.constant 18 : index
      %125 = memref.load %arg1[%c18] : memref<99xf32, #tpu.memory_space<smem>>
      %126 = vector.broadcast %125 : f32 to vector<1x256xf32>
      %127 = arith.mulf %126, %108 : vector<1x256xf32>
      %128 = arith.addf %97, %127 : vector<1x256xf32>
      %c19 = arith.constant 19 : index
      %129 = memref.load %arg1[%c19] : memref<99xf32, #tpu.memory_space<smem>>
      %130 = vector.broadcast %129 : f32 to vector<1x256xf32>
      %131 = arith.mulf %130, %108 : vector<1x256xf32>
      %132 = arith.addf %101, %131 : vector<1x256xf32>
      %c20 = arith.constant 20 : index
      %133 = memref.load %arg1[%c20] : memref<99xf32, #tpu.memory_space<smem>>
      %134 = vector.broadcast %133 : f32 to vector<1x256xf32>
      %135 = arith.mulf %134, %108 : vector<1x256xf32>
      %136 = arith.addf %105, %135 : vector<1x256xf32>
      %c21 = arith.constant 21 : index
      %137 = memref.load %arg1[%c21] : memref<99xf32, #tpu.memory_space<smem>>
      %138 = vector.broadcast %137 : f32 to vector<1x256xf32>
      %139 = arith.mulf %138, %34 : vector<1x256xf32>
      %140 = arith.addf %112, %139 : vector<1x256xf32>
      %c22 = arith.constant 22 : index
      %141 = memref.load %arg1[%c22] : memref<99xf32, #tpu.memory_space<smem>>
      %142 = vector.broadcast %141 : f32 to vector<1x256xf32>
      %143 = arith.mulf %142, %34 : vector<1x256xf32>
      %144 = arith.addf %116, %143 : vector<1x256xf32>
      %c23 = arith.constant 23 : index
      %145 = memref.load %arg1[%c23] : memref<99xf32, #tpu.memory_space<smem>>
      %146 = vector.broadcast %145 : f32 to vector<1x256xf32>
      %147 = arith.mulf %146, %34 : vector<1x256xf32>
      %148 = arith.addf %120, %147 : vector<1x256xf32>
      %c24 = arith.constant 24 : index
      %149 = memref.load %arg1[%c24] : memref<99xf32, #tpu.memory_space<smem>>
      %150 = vector.broadcast %149 : f32 to vector<1x256xf32>
      %151 = arith.mulf %150, %34 : vector<1x256xf32>
      %152 = arith.addf %124, %151 : vector<1x256xf32>
      %c25 = arith.constant 25 : index
      %153 = memref.load %arg1[%c25] : memref<99xf32, #tpu.memory_space<smem>>
      %154 = vector.broadcast %153 : f32 to vector<1x256xf32>
      %155 = arith.mulf %154, %34 : vector<1x256xf32>
      %156 = arith.addf %128, %155 : vector<1x256xf32>
      %c26 = arith.constant 26 : index
      %157 = memref.load %arg1[%c26] : memref<99xf32, #tpu.memory_space<smem>>
      %158 = vector.broadcast %157 : f32 to vector<1x256xf32>
      %159 = arith.mulf %158, %34 : vector<1x256xf32>
      %160 = arith.addf %132, %159 : vector<1x256xf32>
      %c27 = arith.constant 27 : index
      %161 = memref.load %arg1[%c27] : memref<99xf32, #tpu.memory_space<smem>>
      %162 = vector.broadcast %161 : f32 to vector<1x256xf32>
      %163 = arith.mulf %162, %34 : vector<1x256xf32>
      %164 = arith.addf %136, %163 : vector<1x256xf32>
      %c240_i32_24 = arith.constant 240 : i32
      %165 = tpu.dynamic_rotate %34 by %c240_i32_24 dim 1 : vector<1x256xf32>, i32 -> vector<1x256xf32>
      %cst_25 = arith.constant 0.000000e+00 : f32
      %166 = vector.broadcast %cst_25 : f32 to vector<1x256xf32>
      %167 = arith.select %16, %165, %166 : vector<1x256xi1>, vector<1x256xf32>
      %c28 = arith.constant 28 : index
      %168 = memref.load %arg1[%c28] : memref<99xf32, #tpu.memory_space<smem>>
      %169 = vector.broadcast %168 : f32 to vector<1x256xf32>
      %170 = arith.mulf %169, %167 : vector<1x256xf32>
      %171 = arith.addf %140, %170 : vector<1x256xf32>
      %c29 = arith.constant 29 : index
      %172 = memref.load %arg1[%c29] : memref<99xf32, #tpu.memory_space<smem>>
      %173 = vector.broadcast %172 : f32 to vector<1x256xf32>
      %174 = arith.mulf %173, %167 : vector<1x256xf32>
      %175 = arith.addf %144, %174 : vector<1x256xf32>
      %c30 = arith.constant 30 : index
      %176 = memref.load %arg1[%c30] : memref<99xf32, #tpu.memory_space<smem>>
      %177 = vector.broadcast %176 : f32 to vector<1x256xf32>
      %178 = arith.mulf %177, %167 : vector<1x256xf32>
      %179 = arith.addf %148, %178 : vector<1x256xf32>
      %c31 = arith.constant 31 : index
      %180 = memref.load %arg1[%c31] : memref<99xf32, #tpu.memory_space<smem>>
      %181 = vector.broadcast %180 : f32 to vector<1x256xf32>
      %182 = arith.mulf %181, %167 : vector<1x256xf32>
      %183 = arith.addf %152, %182 : vector<1x256xf32>
      %c32 = arith.constant 32 : index
      %184 = memref.load %arg1[%c32] : memref<99xf32, #tpu.memory_space<smem>>
      %185 = vector.broadcast %184 : f32 to vector<1x256xf32>
      %186 = arith.mulf %185, %167 : vector<1x256xf32>
      %187 = arith.addf %156, %186 : vector<1x256xf32>
      %c33 = arith.constant 33 : index
      %188 = memref.load %arg1[%c33] : memref<99xf32, #tpu.memory_space<smem>>
      %189 = vector.broadcast %188 : f32 to vector<1x256xf32>
      %190 = arith.mulf %189, %167 : vector<1x256xf32>
      %191 = arith.addf %160, %190 : vector<1x256xf32>
      %c34 = arith.constant 34 : index
      %192 = memref.load %arg1[%c34] : memref<99xf32, #tpu.memory_space<smem>>
      %193 = vector.broadcast %192 : f32 to vector<1x256xf32>
      %194 = arith.mulf %193, %167 : vector<1x256xf32>
      %195 = arith.addf %164, %194 : vector<1x256xf32>
      %c224_i32_26 = arith.constant 224 : i32
      %196 = tpu.dynamic_rotate %34 by %c224_i32_26 dim 1 : vector<1x256xf32>, i32 -> vector<1x256xf32>
      %cst_27 = arith.constant 0.000000e+00 : f32
      %197 = vector.broadcast %cst_27 : f32 to vector<1x256xf32>
      %198 = arith.select %20, %196, %197 : vector<1x256xi1>, vector<1x256xf32>
      %c35 = arith.constant 35 : index
      %199 = memref.load %arg1[%c35] : memref<99xf32, #tpu.memory_space<smem>>
      %200 = vector.broadcast %199 : f32 to vector<1x256xf32>
      %201 = arith.mulf %200, %198 : vector<1x256xf32>
      %202 = arith.addf %171, %201 : vector<1x256xf32>
      %c36 = arith.constant 36 : index
      %203 = memref.load %arg1[%c36] : memref<99xf32, #tpu.memory_space<smem>>
      %204 = vector.broadcast %203 : f32 to vector<1x256xf32>
      %205 = arith.mulf %204, %198 : vector<1x256xf32>
      %206 = arith.addf %175, %205 : vector<1x256xf32>
      %c37 = arith.constant 37 : index
      %207 = memref.load %arg1[%c37] : memref<99xf32, #tpu.memory_space<smem>>
      %208 = vector.broadcast %207 : f32 to vector<1x256xf32>
      %209 = arith.mulf %208, %198 : vector<1x256xf32>
      %210 = arith.addf %179, %209 : vector<1x256xf32>
      %c38 = arith.constant 38 : index
      %211 = memref.load %arg1[%c38] : memref<99xf32, #tpu.memory_space<smem>>
      %212 = vector.broadcast %211 : f32 to vector<1x256xf32>
      %213 = arith.mulf %212, %198 : vector<1x256xf32>
      %214 = arith.addf %183, %213 : vector<1x256xf32>
      %c39 = arith.constant 39 : index
      %215 = memref.load %arg1[%c39] : memref<99xf32, #tpu.memory_space<smem>>
      %216 = vector.broadcast %215 : f32 to vector<1x256xf32>
      %217 = arith.mulf %216, %198 : vector<1x256xf32>
      %218 = arith.addf %187, %217 : vector<1x256xf32>
      %c40 = arith.constant 40 : index
      %219 = memref.load %arg1[%c40] : memref<99xf32, #tpu.memory_space<smem>>
      %220 = vector.broadcast %219 : f32 to vector<1x256xf32>
      %221 = arith.mulf %220, %198 : vector<1x256xf32>
      %222 = arith.addf %191, %221 : vector<1x256xf32>
      %c41 = arith.constant 41 : index
      %223 = memref.load %arg1[%c41] : memref<99xf32, #tpu.memory_space<smem>>
      %224 = vector.broadcast %223 : f32 to vector<1x256xf32>
      %225 = arith.mulf %224, %198 : vector<1x256xf32>
      %226 = arith.addf %195, %225 : vector<1x256xf32>
      %c208_i32_28 = arith.constant 208 : i32
      %227 = tpu.dynamic_rotate %34 by %c208_i32_28 dim 1 : vector<1x256xf32>, i32 -> vector<1x256xf32>
      %cst_29 = arith.constant 0.000000e+00 : f32
      %228 = vector.broadcast %cst_29 : f32 to vector<1x256xf32>
      %229 = arith.select %24, %227, %228 : vector<1x256xi1>, vector<1x256xf32>
      %c42 = arith.constant 42 : index
      %230 = memref.load %arg1[%c42] : memref<99xf32, #tpu.memory_space<smem>>
      %231 = vector.broadcast %230 : f32 to vector<1x256xf32>
      %232 = arith.mulf %231, %229 : vector<1x256xf32>
      %233 = arith.addf %202, %232 : vector<1x256xf32>
      %c43 = arith.constant 43 : index
      %234 = memref.load %arg1[%c43] : memref<99xf32, #tpu.memory_space<smem>>
      %235 = vector.broadcast %234 : f32 to vector<1x256xf32>
      %236 = arith.mulf %235, %229 : vector<1x256xf32>
      %237 = arith.addf %206, %236 : vector<1x256xf32>
      %c44 = arith.constant 44 : index
      %238 = memref.load %arg1[%c44] : memref<99xf32, #tpu.memory_space<smem>>
      %239 = vector.broadcast %238 : f32 to vector<1x256xf32>
      %240 = arith.mulf %239, %229 : vector<1x256xf32>
      %241 = arith.addf %210, %240 : vector<1x256xf32>
      %c45 = arith.constant 45 : index
      %242 = memref.load %arg1[%c45] : memref<99xf32, #tpu.memory_space<smem>>
      %243 = vector.broadcast %242 : f32 to vector<1x256xf32>
      %244 = arith.mulf %243, %229 : vector<1x256xf32>
      %245 = arith.addf %214, %244 : vector<1x256xf32>
      %c46 = arith.constant 46 : index
      %246 = memref.load %arg1[%c46] : memref<99xf32, #tpu.memory_space<smem>>
      %247 = vector.broadcast %246 : f32 to vector<1x256xf32>
      %248 = arith.mulf %247, %229 : vector<1x256xf32>
      %249 = arith.addf %218, %248 : vector<1x256xf32>
      %c47 = arith.constant 47 : index
      %250 = memref.load %arg1[%c47] : memref<99xf32, #tpu.memory_space<smem>>
      %251 = vector.broadcast %250 : f32 to vector<1x256xf32>
      %252 = arith.mulf %251, %229 : vector<1x256xf32>
      %253 = arith.addf %222, %252 : vector<1x256xf32>
      %c48 = arith.constant 48 : index
      %254 = memref.load %arg1[%c48] : memref<99xf32, #tpu.memory_space<smem>>
      %255 = vector.broadcast %254 : f32 to vector<1x256xf32>
      %256 = arith.mulf %255, %229 : vector<1x256xf32>
      %257 = arith.addf %226, %256 : vector<1x256xf32>
      %c48_i32_30 = arith.constant 48 : i32
      %258 = tpu.dynamic_rotate %36 by %c48_i32_30 dim 1 : vector<1x256xf32>, i32 -> vector<1x256xf32>
      %cst_31 = arith.constant 0.000000e+00 : f32
      %259 = vector.broadcast %cst_31 : f32 to vector<1x256xf32>
      %260 = arith.select %4, %258, %259 : vector<1x256xi1>, vector<1x256xf32>
      %c49 = arith.constant 49 : index
      %261 = memref.load %arg1[%c49] : memref<99xf32, #tpu.memory_space<smem>>
      %262 = vector.broadcast %261 : f32 to vector<1x256xf32>
      %263 = arith.mulf %262, %260 : vector<1x256xf32>
      %264 = arith.addf %233, %263 : vector<1x256xf32>
      %c50 = arith.constant 50 : index
      %265 = memref.load %arg1[%c50] : memref<99xf32, #tpu.memory_space<smem>>
      %266 = vector.broadcast %265 : f32 to vector<1x256xf32>
      %267 = arith.mulf %266, %260 : vector<1x256xf32>
      %268 = arith.addf %237, %267 : vector<1x256xf32>
      %c51 = arith.constant 51 : index
      %269 = memref.load %arg1[%c51] : memref<99xf32, #tpu.memory_space<smem>>
      %270 = vector.broadcast %269 : f32 to vector<1x256xf32>
      %271 = arith.mulf %270, %260 : vector<1x256xf32>
      %272 = arith.addf %241, %271 : vector<1x256xf32>
      %c52 = arith.constant 52 : index
      %273 = memref.load %arg1[%c52] : memref<99xf32, #tpu.memory_space<smem>>
      %274 = vector.broadcast %273 : f32 to vector<1x256xf32>
      %275 = arith.mulf %274, %260 : vector<1x256xf32>
      %276 = arith.addf %245, %275 : vector<1x256xf32>
      %c53 = arith.constant 53 : index
      %277 = memref.load %arg1[%c53] : memref<99xf32, #tpu.memory_space<smem>>
      %278 = vector.broadcast %277 : f32 to vector<1x256xf32>
      %279 = arith.mulf %278, %260 : vector<1x256xf32>
      %280 = arith.addf %249, %279 : vector<1x256xf32>
      %c54 = arith.constant 54 : index
      %281 = memref.load %arg1[%c54] : memref<99xf32, #tpu.memory_space<smem>>
      %282 = vector.broadcast %281 : f32 to vector<1x256xf32>
      %283 = arith.mulf %282, %260 : vector<1x256xf32>
      %284 = arith.addf %253, %283 : vector<1x256xf32>
      %c55 = arith.constant 55 : index
      %285 = memref.load %arg1[%c55] : memref<99xf32, #tpu.memory_space<smem>>
      %286 = vector.broadcast %285 : f32 to vector<1x256xf32>
      %287 = arith.mulf %286, %260 : vector<1x256xf32>
      %288 = arith.addf %257, %287 : vector<1x256xf32>
      %c32_i32_32 = arith.constant 32 : i32
      %289 = tpu.dynamic_rotate %36 by %c32_i32_32 dim 1 : vector<1x256xf32>, i32 -> vector<1x256xf32>
      %cst_33 = arith.constant 0.000000e+00 : f32
      %290 = vector.broadcast %cst_33 : f32 to vector<1x256xf32>
      %291 = arith.select %8, %289, %290 : vector<1x256xi1>, vector<1x256xf32>
      %c56 = arith.constant 56 : index
      %292 = memref.load %arg1[%c56] : memref<99xf32, #tpu.memory_space<smem>>
      %293 = vector.broadcast %292 : f32 to vector<1x256xf32>
      %294 = arith.mulf %293, %291 : vector<1x256xf32>
      %295 = arith.addf %264, %294 : vector<1x256xf32>
      %c57 = arith.constant 57 : index
      %296 = memref.load %arg1[%c57] : memref<99xf32, #tpu.memory_space<smem>>
      %297 = vector.broadcast %296 : f32 to vector<1x256xf32>
      %298 = arith.mulf %297, %291 : vector<1x256xf32>
      %299 = arith.addf %268, %298 : vector<1x256xf32>
      %c58 = arith.constant 58 : index
      %300 = memref.load %arg1[%c58] : memref<99xf32, #tpu.memory_space<smem>>
      %301 = vector.broadcast %300 : f32 to vector<1x256xf32>
      %302 = arith.mulf %301, %291 : vector<1x256xf32>
      %303 = arith.addf %272, %302 : vector<1x256xf32>
      %c59 = arith.constant 59 : index
      %304 = memref.load %arg1[%c59] : memref<99xf32, #tpu.memory_space<smem>>
      %305 = vector.broadcast %304 : f32 to vector<1x256xf32>
      %306 = arith.mulf %305, %291 : vector<1x256xf32>
      %307 = arith.addf %276, %306 : vector<1x256xf32>
      %c60 = arith.constant 60 : index
      %308 = memref.load %arg1[%c60] : memref<99xf32, #tpu.memory_space<smem>>
      %309 = vector.broadcast %308 : f32 to vector<1x256xf32>
      %310 = arith.mulf %309, %291 : vector<1x256xf32>
      %311 = arith.addf %280, %310 : vector<1x256xf32>
      %c61 = arith.constant 61 : index
      %312 = memref.load %arg1[%c61] : memref<99xf32, #tpu.memory_space<smem>>
      %313 = vector.broadcast %312 : f32 to vector<1x256xf32>
      %314 = arith.mulf %313, %291 : vector<1x256xf32>
      %315 = arith.addf %284, %314 : vector<1x256xf32>
      %c62 = arith.constant 62 : index
      %316 = memref.load %arg1[%c62] : memref<99xf32, #tpu.memory_space<smem>>
      %317 = vector.broadcast %316 : f32 to vector<1x256xf32>
      %318 = arith.mulf %317, %291 : vector<1x256xf32>
      %319 = arith.addf %288, %318 : vector<1x256xf32>
      %c16_i32_34 = arith.constant 16 : i32
      %320 = tpu.dynamic_rotate %36 by %c16_i32_34 dim 1 : vector<1x256xf32>, i32 -> vector<1x256xf32>
      %cst_35 = arith.constant 0.000000e+00 : f32
      %321 = vector.broadcast %cst_35 : f32 to vector<1x256xf32>
      %322 = arith.select %12, %320, %321 : vector<1x256xi1>, vector<1x256xf32>
      %c63 = arith.constant 63 : index
      %323 = memref.load %arg1[%c63] : memref<99xf32, #tpu.memory_space<smem>>
      %324 = vector.broadcast %323 : f32 to vector<1x256xf32>
      %325 = arith.mulf %324, %322 : vector<1x256xf32>
      %326 = arith.addf %295, %325 : vector<1x256xf32>
      %c64 = arith.constant 64 : index
      %327 = memref.load %arg1[%c64] : memref<99xf32, #tpu.memory_space<smem>>
      %328 = vector.broadcast %327 : f32 to vector<1x256xf32>
      %329 = arith.mulf %328, %322 : vector<1x256xf32>
      %330 = arith.addf %299, %329 : vector<1x256xf32>
      %c65 = arith.constant 65 : index
      %331 = memref.load %arg1[%c65] : memref<99xf32, #tpu.memory_space<smem>>
      %332 = vector.broadcast %331 : f32 to vector<1x256xf32>
      %333 = arith.mulf %332, %322 : vector<1x256xf32>
      %334 = arith.addf %303, %333 : vector<1x256xf32>
      %c66 = arith.constant 66 : index
      %335 = memref.load %arg1[%c66] : memref<99xf32, #tpu.memory_space<smem>>
      %336 = vector.broadcast %335 : f32 to vector<1x256xf32>
      %337 = arith.mulf %336, %322 : vector<1x256xf32>
      %338 = arith.addf %307, %337 : vector<1x256xf32>
      %c67 = arith.constant 67 : index
      %339 = memref.load %arg1[%c67] : memref<99xf32, #tpu.memory_space<smem>>
      %340 = vector.broadcast %339 : f32 to vector<1x256xf32>
      %341 = arith.mulf %340, %322 : vector<1x256xf32>
      %342 = arith.addf %311, %341 : vector<1x256xf32>
      %c68 = arith.constant 68 : index
      %343 = memref.load %arg1[%c68] : memref<99xf32, #tpu.memory_space<smem>>
      %344 = vector.broadcast %343 : f32 to vector<1x256xf32>
      %345 = arith.mulf %344, %322 : vector<1x256xf32>
      %346 = arith.addf %315, %345 : vector<1x256xf32>
      %c69 = arith.constant 69 : index
      %347 = memref.load %arg1[%c69] : memref<99xf32, #tpu.memory_space<smem>>
      %348 = vector.broadcast %347 : f32 to vector<1x256xf32>
      %349 = arith.mulf %348, %322 : vector<1x256xf32>
      %350 = arith.addf %319, %349 : vector<1x256xf32>
      %c70 = arith.constant 70 : index
      %351 = memref.load %arg1[%c70] : memref<99xf32, #tpu.memory_space<smem>>
      %352 = vector.broadcast %351 : f32 to vector<1x256xf32>
      %353 = arith.mulf %352, %36 : vector<1x256xf32>
      %354 = arith.addf %326, %353 : vector<1x256xf32>
      %c71 = arith.constant 71 : index
      %355 = memref.load %arg1[%c71] : memref<99xf32, #tpu.memory_space<smem>>
      %356 = vector.broadcast %355 : f32 to vector<1x256xf32>
      %357 = arith.mulf %356, %36 : vector<1x256xf32>
      %358 = arith.addf %330, %357 : vector<1x256xf32>
      %c72 = arith.constant 72 : index
      %359 = memref.load %arg1[%c72] : memref<99xf32, #tpu.memory_space<smem>>
      %360 = vector.broadcast %359 : f32 to vector<1x256xf32>
      %361 = arith.mulf %360, %36 : vector<1x256xf32>
      %362 = arith.addf %334, %361 : vector<1x256xf32>
      %c73 = arith.constant 73 : index
      %363 = memref.load %arg1[%c73] : memref<99xf32, #tpu.memory_space<smem>>
      %364 = vector.broadcast %363 : f32 to vector<1x256xf32>
      %365 = arith.mulf %364, %36 : vector<1x256xf32>
      %366 = arith.addf %338, %365 : vector<1x256xf32>
      %c74 = arith.constant 74 : index
      %367 = memref.load %arg1[%c74] : memref<99xf32, #tpu.memory_space<smem>>
      %368 = vector.broadcast %367 : f32 to vector<1x256xf32>
      %369 = arith.mulf %368, %36 : vector<1x256xf32>
      %370 = arith.addf %342, %369 : vector<1x256xf32>
      %c75 = arith.constant 75 : index
      %371 = memref.load %arg1[%c75] : memref<99xf32, #tpu.memory_space<smem>>
      %372 = vector.broadcast %371 : f32 to vector<1x256xf32>
      %373 = arith.mulf %372, %36 : vector<1x256xf32>
      %374 = arith.addf %346, %373 : vector<1x256xf32>
      %c76 = arith.constant 76 : index
      %375 = memref.load %arg1[%c76] : memref<99xf32, #tpu.memory_space<smem>>
      %376 = vector.broadcast %375 : f32 to vector<1x256xf32>
      %377 = arith.mulf %376, %36 : vector<1x256xf32>
      %378 = arith.addf %350, %377 : vector<1x256xf32>
      %c240_i32_36 = arith.constant 240 : i32
      %379 = tpu.dynamic_rotate %36 by %c240_i32_36 dim 1 : vector<1x256xf32>, i32 -> vector<1x256xf32>
      %cst_37 = arith.constant 0.000000e+00 : f32
      %380 = vector.broadcast %cst_37 : f32 to vector<1x256xf32>
      %381 = arith.select %16, %379, %380 : vector<1x256xi1>, vector<1x256xf32>
      %c77 = arith.constant 77 : index
      %382 = memref.load %arg1[%c77] : memref<99xf32, #tpu.memory_space<smem>>
      %383 = vector.broadcast %382 : f32 to vector<1x256xf32>
      %384 = arith.mulf %383, %381 : vector<1x256xf32>
      %385 = arith.addf %354, %384 : vector<1x256xf32>
      %c78 = arith.constant 78 : index
      %386 = memref.load %arg1[%c78] : memref<99xf32, #tpu.memory_space<smem>>
      %387 = vector.broadcast %386 : f32 to vector<1x256xf32>
      %388 = arith.mulf %387, %381 : vector<1x256xf32>
      %389 = arith.addf %358, %388 : vector<1x256xf32>
      %c79 = arith.constant 79 : index
      %390 = memref.load %arg1[%c79] : memref<99xf32, #tpu.memory_space<smem>>
      %391 = vector.broadcast %390 : f32 to vector<1x256xf32>
      %392 = arith.mulf %391, %381 : vector<1x256xf32>
      %393 = arith.addf %362, %392 : vector<1x256xf32>
      %c80 = arith.constant 80 : index
      %394 = memref.load %arg1[%c80] : memref<99xf32, #tpu.memory_space<smem>>
      %395 = vector.broadcast %394 : f32 to vector<1x256xf32>
      %396 = arith.mulf %395, %381 : vector<1x256xf32>
      %397 = arith.addf %366, %396 : vector<1x256xf32>
      %c81 = arith.constant 81 : index
      %398 = memref.load %arg1[%c81] : memref<99xf32, #tpu.memory_space<smem>>
      %399 = vector.broadcast %398 : f32 to vector<1x256xf32>
      %400 = arith.mulf %399, %381 : vector<1x256xf32>
      %401 = arith.addf %370, %400 : vector<1x256xf32>
      %c82 = arith.constant 82 : index
      %402 = memref.load %arg1[%c82] : memref<99xf32, #tpu.memory_space<smem>>
      %403 = vector.broadcast %402 : f32 to vector<1x256xf32>
      %404 = arith.mulf %403, %381 : vector<1x256xf32>
      %405 = arith.addf %374, %404 : vector<1x256xf32>
      %c83 = arith.constant 83 : index
      %406 = memref.load %arg1[%c83] : memref<99xf32, #tpu.memory_space<smem>>
      %407 = vector.broadcast %406 : f32 to vector<1x256xf32>
      %408 = arith.mulf %407, %381 : vector<1x256xf32>
      %409 = arith.addf %378, %408 : vector<1x256xf32>
      %c224_i32_38 = arith.constant 224 : i32
      %410 = tpu.dynamic_rotate %36 by %c224_i32_38 dim 1 : vector<1x256xf32>, i32 -> vector<1x256xf32>
      %cst_39 = arith.constant 0.000000e+00 : f32
      %411 = vector.broadcast %cst_39 : f32 to vector<1x256xf32>
      %412 = arith.select %20, %410, %411 : vector<1x256xi1>, vector<1x256xf32>
      %c84 = arith.constant 84 : index
      %413 = memref.load %arg1[%c84] : memref<99xf32, #tpu.memory_space<smem>>
      %414 = vector.broadcast %413 : f32 to vector<1x256xf32>
      %415 = arith.mulf %414, %412 : vector<1x256xf32>
      %416 = arith.addf %385, %415 : vector<1x256xf32>
      %c85 = arith.constant 85 : index
      %417 = memref.load %arg1[%c85] : memref<99xf32, #tpu.memory_space<smem>>
      %418 = vector.broadcast %417 : f32 to vector<1x256xf32>
      %419 = arith.mulf %418, %412 : vector<1x256xf32>
      %420 = arith.addf %389, %419 : vector<1x256xf32>
      %c86 = arith.constant 86 : index
      %421 = memref.load %arg1[%c86] : memref<99xf32, #tpu.memory_space<smem>>
      %422 = vector.broadcast %421 : f32 to vector<1x256xf32>
      %423 = arith.mulf %422, %412 : vector<1x256xf32>
      %424 = arith.addf %393, %423 : vector<1x256xf32>
      %c87 = arith.constant 87 : index
      %425 = memref.load %arg1[%c87] : memref<99xf32, #tpu.memory_space<smem>>
      %426 = vector.broadcast %425 : f32 to vector<1x256xf32>
      %427 = arith.mulf %426, %412 : vector<1x256xf32>
      %428 = arith.addf %397, %427 : vector<1x256xf32>
      %c88 = arith.constant 88 : index
      %429 = memref.load %arg1[%c88] : memref<99xf32, #tpu.memory_space<smem>>
      %430 = vector.broadcast %429 : f32 to vector<1x256xf32>
      %431 = arith.mulf %430, %412 : vector<1x256xf32>
      %432 = arith.addf %401, %431 : vector<1x256xf32>
      %c89 = arith.constant 89 : index
      %433 = memref.load %arg1[%c89] : memref<99xf32, #tpu.memory_space<smem>>
      %434 = vector.broadcast %433 : f32 to vector<1x256xf32>
      %435 = arith.mulf %434, %412 : vector<1x256xf32>
      %436 = arith.addf %405, %435 : vector<1x256xf32>
      %c90 = arith.constant 90 : index
      %437 = memref.load %arg1[%c90] : memref<99xf32, #tpu.memory_space<smem>>
      %438 = vector.broadcast %437 : f32 to vector<1x256xf32>
      %439 = arith.mulf %438, %412 : vector<1x256xf32>
      %440 = arith.addf %409, %439 : vector<1x256xf32>
      %c208_i32_40 = arith.constant 208 : i32
      %441 = tpu.dynamic_rotate %36 by %c208_i32_40 dim 1 : vector<1x256xf32>, i32 -> vector<1x256xf32>
      %cst_41 = arith.constant 0.000000e+00 : f32
      %442 = vector.broadcast %cst_41 : f32 to vector<1x256xf32>
      %443 = arith.select %24, %441, %442 : vector<1x256xi1>, vector<1x256xf32>
      %c91 = arith.constant 91 : index
      %444 = memref.load %arg1[%c91] : memref<99xf32, #tpu.memory_space<smem>>
      %445 = vector.broadcast %444 : f32 to vector<1x256xf32>
      %446 = arith.mulf %445, %443 : vector<1x256xf32>
      %447 = arith.addf %416, %446 : vector<1x256xf32>
      %c92 = arith.constant 92 : index
      %448 = memref.load %arg1[%c92] : memref<99xf32, #tpu.memory_space<smem>>
      %449 = vector.broadcast %448 : f32 to vector<1x256xf32>
      %450 = arith.mulf %449, %443 : vector<1x256xf32>
      %451 = arith.addf %420, %450 : vector<1x256xf32>
      %c93 = arith.constant 93 : index
      %452 = memref.load %arg1[%c93] : memref<99xf32, #tpu.memory_space<smem>>
      %453 = vector.broadcast %452 : f32 to vector<1x256xf32>
      %454 = arith.mulf %453, %443 : vector<1x256xf32>
      %455 = arith.addf %424, %454 : vector<1x256xf32>
      %c94 = arith.constant 94 : index
      %456 = memref.load %arg1[%c94] : memref<99xf32, #tpu.memory_space<smem>>
      %457 = vector.broadcast %456 : f32 to vector<1x256xf32>
      %458 = arith.mulf %457, %443 : vector<1x256xf32>
      %459 = arith.addf %428, %458 : vector<1x256xf32>
      %c95 = arith.constant 95 : index
      %460 = memref.load %arg1[%c95] : memref<99xf32, #tpu.memory_space<smem>>
      %461 = vector.broadcast %460 : f32 to vector<1x256xf32>
      %462 = arith.mulf %461, %443 : vector<1x256xf32>
      %463 = arith.addf %432, %462 : vector<1x256xf32>
      %c96 = arith.constant 96 : index
      %464 = memref.load %arg1[%c96] : memref<99xf32, #tpu.memory_space<smem>>
      %465 = vector.broadcast %464 : f32 to vector<1x256xf32>
      %466 = arith.mulf %465, %443 : vector<1x256xf32>
      %467 = arith.addf %436, %466 : vector<1x256xf32>
      %c97 = arith.constant 97 : index
      %468 = memref.load %arg1[%c97] : memref<99xf32, #tpu.memory_space<smem>>
      %469 = vector.broadcast %468 : f32 to vector<1x256xf32>
      %470 = arith.mulf %469, %443 : vector<1x256xf32>
      %471 = arith.addf %440, %470 : vector<1x256xf32>
      %c3_i32_42 = arith.constant 3 : i32
      %472 = tpu.dynamic_rotate %447 by %c3_i32_42 dim 1 : vector<1x256xf32>, i32 -> vector<1x256xf32>
      %cst_43 = arith.constant 0.000000e+00 : f32
      %473 = vector.broadcast %cst_43 : f32 to vector<1x256xf32>
      %474 = arith.select %6, %472, %473 : vector<1x256xi1>, vector<1x256xf32>
      %475 = arith.addf %459, %474 : vector<1x256xf32>
      %c2_i32_44 = arith.constant 2 : i32
      %476 = tpu.dynamic_rotate %451 by %c2_i32_44 dim 1 : vector<1x256xf32>, i32 -> vector<1x256xf32>
      %cst_45 = arith.constant 0.000000e+00 : f32
      %477 = vector.broadcast %cst_45 : f32 to vector<1x256xf32>
      %478 = arith.select %10, %476, %477 : vector<1x256xi1>, vector<1x256xf32>
      %479 = arith.addf %475, %478 : vector<1x256xf32>
      %c1_i32_46 = arith.constant 1 : i32
      %480 = tpu.dynamic_rotate %455 by %c1_i32_46 dim 1 : vector<1x256xf32>, i32 -> vector<1x256xf32>
      %cst_47 = arith.constant 0.000000e+00 : f32
      %481 = vector.broadcast %cst_47 : f32 to vector<1x256xf32>
      %482 = arith.select %14, %480, %481 : vector<1x256xi1>, vector<1x256xf32>
      %483 = arith.addf %479, %482 : vector<1x256xf32>
      %c255_i32 = arith.constant 255 : i32
      %484 = tpu.dynamic_rotate %463 by %c255_i32 dim 1 : vector<1x256xf32>, i32 -> vector<1x256xf32>
      %cst_48 = arith.constant 0.000000e+00 : f32
      %485 = vector.broadcast %cst_48 : f32 to vector<1x256xf32>
      %486 = arith.select %18, %484, %485 : vector<1x256xi1>, vector<1x256xf32>
      %487 = arith.addf %483, %486 : vector<1x256xf32>
      %c254_i32 = arith.constant 254 : i32
      %488 = tpu.dynamic_rotate %467 by %c254_i32 dim 1 : vector<1x256xf32>, i32 -> vector<1x256xf32>
      %cst_49 = arith.constant 0.000000e+00 : f32
      %489 = vector.broadcast %cst_49 : f32 to vector<1x256xf32>
      %490 = arith.select %22, %488, %489 : vector<1x256xi1>, vector<1x256xf32>
      %491 = arith.addf %487, %490 : vector<1x256xf32>
      %c253_i32 = arith.constant 253 : i32
      %492 = tpu.dynamic_rotate %471 by %c253_i32 dim 1 : vector<1x256xf32>, i32 -> vector<1x256xf32>
      %cst_50 = arith.constant 0.000000e+00 : f32
      %493 = vector.broadcast %cst_50 : f32 to vector<1x256xf32>
      %494 = arith.select %26, %492, %493 : vector<1x256xi1>, vector<1x256xf32>
      %495 = arith.addf %491, %494 : vector<1x256xf32>
      %c98 = arith.constant 98 : index
      %496 = memref.load %arg1[%c98] : memref<99xf32, #tpu.memory_space<smem>>
      %497 = vector.broadcast %496 : f32 to vector<1x256xf32>
      %498 = arith.addf %495, %497 : vector<1x256xf32>
      %499 = arith.negf %498 : vector<1x256xf32>
      %500 = math.exp %499 : vector<1x256xf32>
      %cst_51 = arith.constant 1.000000e+00 : f32
      %501 = vector.broadcast %cst_51 : f32 to vector<1x256xf32>
      %502 = arith.addf %501, %500 : vector<1x256xf32>
      %503 = arith.divf %501, %502 : vector<1x256xf32>
      %504 = vector.shape_cast %503 : vector<1x256xf32> to vector<1x256xf32>
      %505 = vector.broadcast %504 : vector<1x256xf32> to vector<4x256xf32>
      %c0_i32_52 = arith.constant 0 : i32
      %c4_i32 = arith.constant 4 : i32
      %506 = arith.muli %c0_i32_52, %c4_i32 : i32
      %507 = tpu.assume_multiple %506, 4 : i32
      %508 = arith.index_cast %arg4 : i32 to index
      %509 = arith.index_cast %507 : i32 to index
      %c0_53 = arith.constant 0 : index
      %510 = vector.load %arg2[%508, %509, %c0_53] : memref<2x4x256xf32, #tpu.memory_space<vmem>>, vector<1x4x256xf32>
      %511 = vector.shape_cast %510 : vector<1x4x256xf32> to vector<4x256xf32>
      %512 = arith.mulf %511, %505 : vector<4x256xf32>
      %513 = arith.index_cast %arg4 : i32 to index
      %514 = arith.index_cast %507 : i32 to index
      %c0_54 = arith.constant 0 : index
      %515 = vector.load %arg3[%513, %514, %c0_54] : memref<2x4x256xf32, #tpu.memory_space<vmem>>, vector<1x4x256xf32>
      %516 = vector.shape_cast %515 : vector<1x4x256xf32> to vector<4x256xf32>
      %517 = vector.shape_cast %512 : vector<4x256xf32> to vector<1x4x256xf32>
      tpu.vector_store %arg3[%513, %514, %c0_54], %517 {strides = array<i32>} : memref<2x4x256xf32, #tpu.memory_space<vmem>>, vector<1x4x256xf32>,
      %c1_i32_55 = arith.constant 1 : i32
    }
    %c2_i32_3 = arith.constant 2 : i32
    return
  }
  func.func @transform_0(%arg0: i32) -> i32 {
    %c0_i32 = arith.constant 0 : i32
    %c0_i32_0 = arith.constant 0 : i32
    return %c0_i32 : i32
  }
  func.func @transform_1(%arg0: i32) -> (i32, i32, i32) {
    %c0_i32 = arith.constant 0 : i32
    %c0_i32_0 = arith.constant 0 : i32
    %c0_i32_1 = arith.constant 0 : i32
    return %arg0, %c0_i32, %c0_i32_0 : i32, i32, i32
  }
  func.func @transform_2(%arg0: i32) -> (i32, i32, i32) {
    %c0_i32 = arith.constant 0 : i32
    %c0_i32_0 = arith.constant 0 : i32
    %c0_i32_1 = arith.constant 0 : i32
    return %arg0, %c0_i32, %c0_i32_0 : i32, i32, i32
  }
}

</mosaic_0001>

<llo_original>
// kernel: tpu_custom_call.1
$region0: #{tpu_custom_call.1}
  #allocation0 [shape = 'u32[]', space=smem, size = 0x4, offset = 0x4, fixed_abs, tag = 'smem constant byte address 0x4 - core index']
  #allocation1 [shape = 'u32[72,128]{1,0:T(1,128)}', space=vmem, size = 0x9000, scoped, tag = 'internal scratch']
  %s0 = inlined_call_operand.hbm [shape: f32[99], index: 0, kind: input, shape index: {}]
  %s1 = inlined_call_operand.hbm [shape: f32[2,4,256], index: 1, kind: input, shape index: {}]
  %s2 = inlined_call_operand.hbm [shape: f32[2,4,256], index: 2, kind: output, shape index: {}]
  %s3 = sld [smem:[#allocation0]]
  $region33: #{tpu_custom_call.1} parent=0
    _
  %s5 = ssub.s32 1, %s3
  %s6 = scalar_select 0, %s5, %s3
  $region1: #{tpu_custom_call.1} parent=0
    #allocation2 [shape = 'u8[512]{0}', space=smem, size = 0x200, scoped, tag = 'input window, operand 0, single buffered']
    #allocation3 [shape = 's32[1]{0}', space=sflag, size = 0x4, scoped, tag = 'scoped memory for tpu_custom_call.1']
    #allocation4 [shape = 's32[1]{0}', space=sflag, size = 0x4, scoped, tag = 'scoped memory for tpu_custom_call.1']
    #allocation5 [shape = 's32[1]{0}', space=sflag, size = 0x4, scoped, tag = 'scoped memory for tpu_custom_call.1']
    #allocation6 [shape = 'u8[8192]{0}', space=vmem, size = 0x2000, scoped, tag = 'input window, operand 1, single buffered']
    #allocation7 [shape = 'u8[8192]{0}', space=vmem, size = 0x2000, scoped, tag = 'output window, operand 0, single buffered']
    %7 = vsyncpa [#allocation5], 0
    %8 = vsyncpa [#allocation3], 0
    %9 = vsyncpa [#allocation4], 0
    // Predicated region
    $region2: #{tpu_custom_call.1} parent=1 // pred_check
      _
    $region3: #{tpu_custom_call.1} parent=1 // pred_check_branch
      %11 = sbr.rel (0) target = $region5
    $region4: #{tpu_custom_call.1} parent=1 // pred_region
      %13 = vsyncadd [#allocation5], 0
      %s15 = sshll.u32 %s0, 4
      %s16 = int_to_ptr.hbm [resolvable:$true] %s15
      %18 = dma.hbm_to_smem %s16, 16, [#allocation2], [#allocation5]
    $region5: #{tpu_custom_call.1} parent=1 // pred_fallthru
      _
    // Predicated region
    $region6: #{tpu_custom_call.1} parent=1 // pred_check
      _
    $region7: #{tpu_custom_call.1} parent=1 // pred_check_branch
      %20 = sbr.rel (0) target = $region9
    $region8: #{tpu_custom_call.1} parent=1 // pred_region
      %22 = vsyncadd [#allocation3], 0
      %s23 = sshll.u32 %s1, 4
      %s24 = int_to_ptr.hbm [resolvable:$true] %s23
      %s25 = sshll.u32 [#allocation6], 4
      %s26 = int_to_ptr.vmem [resolvable:$true] %s25
      %31 = dma.hbm_to_vmem [thread:$0]  %s24, 256, %s26, [#allocation3], 128, 128, 8
    $region9: #{tpu_custom_call.1} parent=1 // pred_fallthru
      _
    // Predicated region
    $region10: #{tpu_custom_call.1} parent=1 // pred_check
      _
    $region11: #{tpu_custom_call.1} parent=1 // pred_check_branch
      %33 = sbr.rel (0) target = $region13
    $region12: #{tpu_custom_call.1} parent=1 // pred_region
      %35 = dma.done [#allocation5], 16
    $region13: #{tpu_custom_call.1} parent=1 // pred_fallthru
      _
    // Predicated region
    $region14: #{tpu_custom_call.1} parent=1 // pred_check
      _
    $region15: #{tpu_custom_call.1} parent=1 // pred_check_branch
      %37 = sbr.rel (0) target = $region17
    $region16: #{tpu_custom_call.1} parent=1 // pred_region
      %39 = dma.done [#allocation3], 256
    $region17: #{tpu_custom_call.1} parent=1 // pred_fallthru
      _
    %40 = sfence
    %v41 = vlaneseq
    %v42 = vand.u32 %v41, 127
    %v43 = vadd.s32 %v42, 128
    %v44 = vand.u32 %v42, 15
    %v45 = vand.u32 %v43, 15
    %vm46 = vcmp.ge.s32.totalorder %v42, 48
    %vm47 = vcmp.ge.s32.totalorder %v43, 48
    %vm48 = vcmp.ge.s32.totalorder %v44, 3
    %vm49 = vcmp.ge.s32.totalorder %v45, 3
    %vm50 = vcmp.ge.s32.totalorder %v42, 32
    %vm51 = vcmp.ge.s32.totalorder %v43, 32
    %vm52 = vcmp.ge.s32.totalorder %v44, 2
    %vm53 = vcmp.ge.s32.totalorder %v45, 2
    %vm54 = vcmp.ge.s32.totalorder %v42, 16
    %vm55 = vcmp.ge.s32.totalorder %v43, 16
    %vm56 = vcmp.ge.s32.totalorder %v44, 1
    %vm57 = vcmp.ge.s32.totalorder %v45, 1
    %vm58 = vcmp.lt.s32.totalorder %v42, 240
    %vm59 = vcmp.lt.s32.totalorder %v43, 240
    %vm60 = vcmp.lt.s32.totalorder %v44, 15
    %vm61 = vcmp.lt.s32.totalorder %v45, 15
    %vm62 = vcmp.lt.s32.totalorder %v42, 224
    %vm63 = vcmp.lt.s32.totalorder %v43, 224
    %vm64 = vcmp.lt.s32.totalorder %v44, 14
    %vm65 = vcmp.lt.s32.totalorder %v45, 14
    %vm66 = vcmp.lt.s32.totalorder %v42, 208
    %vm67 = vcmp.lt.s32.totalorder %v43, 208
    %vm68 = vcmp.lt.s32.totalorder %v44, 13
    %vm69 = vcmp.lt.s32.totalorder %v45, 13
    loop: start=0, step=1, limit=2
    $region18: #{tpu_custom_call.1} parent=1 // loop_pre_header
      _
    $region19: #{tpu_custom_call.1} parent=1 // loop_header
      %s71 = sphi 0, %s75
      %p72 = scmp.ge.s32.totalorder %s71, 2
    $region20: #{tpu_custom_call.1} parent=1 // loop_header_branch
      %74 = sbr.rel (%p72) target = $region24
    $region21: #{tpu_custom_call.1} parent=1 // loop_body
      %s76 = smul.u32 %s71, 2
      %s77 = smul.addr %s76, 4
      %s78 = scalar_lea.vmem [#allocation6], %s77
      %v79 = vld [vmem:[%s78] sm:$0xff]
      %81 = vst [vmem:[#allocation1] ss:$2 sm:$0xff] %v79
      %v82 = vld.sshfl [vmem:[#allocation1] sm:$0xff pattern:$0x75316420]
      %v83 = vld.sshfl [vmem:[#allocation1 + $0x8] sm:$0xff pattern:$0x75316420]
      %vm86 = vcmask 1043456
      %v87 = vsel %vm86, %v82, -inf
      %v88 = vrot.slane %v87, 4
      %v89 = vmax.f32 %v87, %v88
      %v90 = vrot.slane %v89, 2
      %v91 = vmax.f32 %v89, %v90
      %v92 = vrot.slane %v91, 1
      %v93 = vmax.f32 %v91, %v92
      %v94 = vsel %vm86, %v83, -inf
      %v95 = vrot.slane %v94, 4
      %v96 = vmax.f32 %v94, %v95
      %v97 = vrot.slane %v96, 2
      %v98 = vmax.f32 %v96, %v97
      %v99 = vrot.slane %v98, 1
      %v100 = vmax.f32 %v98, %v99
      %101 = vst [vmem:[#allocation1] ss:$2 sm:$0xff] %v79
      %v102 = vld.sshfl [vmem:[#allocation1] sm:$0xff pattern:$0x75316420]
      %v103 = vld.sshfl [vmem:[#allocation1 + $0x8] sm:$0xff pattern:$0x75316420]
      %v106 = vsel %vm86, %v102, 0.0
      %v107 = vrot.slane %v106, 4
      %v108 = vadd.f32 %v106, %v107
      %v109 = vrot.slane %v108, 2
      %v110 = vadd.f32 %v108, %v109
      %v111 = vrot.slane %v110, 1
      %v112 = vadd.f32 %v110, %v111
      %v113 = vsel %vm86, %v103, 0.0
      %v114 = vrot.slane %v113, 4
      %v115 = vadd.f32 %v113, %v114
      %v116 = vrot.slane %v115, 2
      %v117 = vadd.f32 %v115, %v116
      %v118 = vrot.slane %v117, 1
      %v119 = vadd.f32 %v117, %v118
      %120 = vrot.lane.b32.xlu0 %v93, 48
      %v121 = vpop.permute.xlu0 %120
      %122 = vrot.lane.b32.xlu0 %v100, 48
      %v123 = vpop.permute.xlu0 %122
      %vm124 = vcmp.lt.s32.totalorder %v42, 48
      %v125 = vsel %vm124, %v121, %v123
      %v126 = vsel %vm124, %v123, %v121
      %v127 = vsel %vm46, %v126, 0.0
      %v128 = vsel %vm47, %v125, 0.0
      %s129 = sld [smem:[#allocation2]]
      %v130 = vstv %s129
      %v131 = vmul.f32 %v130, %v127
      %v132 = vmul.f32 %v130, %v128
      %v133 = vadd.f32 %v131, 0.0
      %v134 = vadd.f32 %v132, 0.0
      %s135 = sld [smem:[#allocation2 + $0x1]]
      %v136 = vstv %s135
      %v137 = vmul.f32 %v136, %v127
      %v138 = vmul.f32 %v136, %v128
      %v139 = vadd.f32 %v137, 0.0
      %v140 = vadd.f32 %v138, 0.0
      %s141 = sld [smem:[#allocation2 + $0x2]]
      %v142 = vstv %s141
      %v143 = vmul.f32 %v142, %v127
      %v144 = vmul.f32 %v142, %v128
      %v145 = vadd.f32 %v143, 0.0
      %v146 = vadd.f32 %v144, 0.0
      %s147 = sld [smem:[#allocation2 + $0x3]]
      %v148 = vstv %s147
      %v149 = vmul.f32 %v148, %v127
      %v150 = vmul.f32 %v148, %v128
      %v151 = vadd.f32 %v149, 0.0
      %v152 = vadd.f32 %v150, 0.0
      %s153 = sld [smem:[#allocation2 + $0x4]]
      %v154 = vstv %s153
      %v155 = vmul.f32 %v154, %v127
      %v156 = vmul.f32 %v154, %v128
      %v157 = vadd.f32 %v155, 0.0
      %v158 = vadd.f32 %v156, 0.0
      %s159 = sld [smem:[#allocation2 + $0x5]]
      %v160 = vstv %s159
      %v161 = vmul.f32 %v160, %v127
      %v162 = vmul.f32 %v160, %v128
      %v163 = vadd.f32 %v161, 0.0
      %v164 = vadd.f32 %v162, 0.0
      %s165 = sld [smem:[#allocation2 + $0x6]]
      %v166 = vstv %s165
      %v167 = vmul.f32 %v166, %v127
      %v168 = vmul.f32 %v166, %v128
      %v169 = vadd.f32 %v167, 0.0
      %v170 = vadd.f32 %v168, 0.0
      %171 = vrot.lane.b32.xlu0 %v93, 32
      %v172 = vpop.permute.xlu0 %171
      %173 = vrot.lane.b32.xlu0 %v100, 32
      %v174 = vpop.permute.xlu0 %173
      %vm175 = vcmp.lt.s32.totalorder %v42, 32
      %v176 = vsel %vm175, %v172, %v174
      %v177 = vsel %vm175, %v174, %v172
      %v178 = vsel %vm50, %v177, 0.0
      %v179 = vsel %vm51, %v176, 0.0
      %s180 = sld [smem:[#allocation2 + $0x7]]
      %v181 = vstv %s180
      %v182 = vmul.f32 %v181, %v178
      %v183 = vmul.f32 %v181, %v179
      %v184 = vadd.f32 %v133, %v182
      %v185 = vadd.f32 %v134, %v183
      %s186 = sld [smem:[#allocation2 + $0x8]]
      %v187 = vstv %s186
      %v188 = vmul.f32 %v187, %v178
      %v189 = vmul.f32 %v187, %v179
      %v190 = vadd.f32 %v139, %v188
      %v191 = vadd.f32 %v140, %v189
      %s192 = sld [smem:[#allocation2 + $0x9]]
      %v193 = vstv %s192
      %v194 = vmul.f32 %v193, %v178
      %v195 = vmul.f32 %v193, %v179
      %v196 = vadd.f32 %v145, %v194
      %v197 = vadd.f32 %v146, %v195
      %s198 = sld [smem:[#allocation2 + $0xa]]
      %v199 = vstv %s198
      %v200 = vmul.f32 %v199, %v178
      %v201 = vmul.f32 %v199, %v179
      %v202 = vadd.f32 %v151, %v200
      %v203 = vadd.f32 %v152, %v201
      %s204 = sld [smem:[#allocation2 + $0xb]]
      %v205 = vstv %s204
      %v206 = vmul.f32 %v205, %v178
      %v207 = vmul.f32 %v205, %v179
      %v208 = vadd.f32 %v157, %v206
      %v209 = vadd.f32 %v158, %v207
      %s210 = sld [smem:[#allocation2 + $0xc]]
      %v211 = vstv %s210
      %v212 = vmul.f32 %v211, %v178
      %v213 = vmul.f32 %v211, %v179
      %v214 = vadd.f32 %v163, %v212
      %v215 = vadd.f32 %v164, %v213
      %s216 = sld [smem:[#allocation2 + $0xd]]
      %v217 = vstv %s216
      %v218 = vmul.f32 %v217, %v178
      %v219 = vmul.f32 %v217, %v179
      %v220 = vadd.f32 %v169, %v218
      %v221 = vadd.f32 %v170, %v219
      %222 = vrot.lane.b32.xlu0 %v93, 16
      %v223 = vpop.permute.xlu0 %222
      %224 = vrot.lane.b32.xlu0 %v100, 16
      %v225 = vpop.permute.xlu0 %224
      %vm226 = vcmp.lt.s32.totalorder %v42, 16
      %v227 = vsel %vm226, %v223, %v225
      %v228 = vsel %vm226, %v225, %v223
      %v229 = vsel %vm54, %v228, 0.0
      %v230 = vsel %vm55, %v227, 0.0
      %s231 = sld [smem:[#allocation2 + $0xe]]
      %v232 = vstv %s231
      %v233 = vmul.f32 %v232, %v229
      %v234 = vmul.f32 %v232, %v230
      %v235 = vadd.f32 %v184, %v233
      %v236 = vadd.f32 %v185, %v234
      %s237 = sld [smem:[#allocation2 + $0xf]]
      %v238 = vstv %s237
      %v239 = vmul.f32 %v238, %v229
      %v240 = vmul.f32 %v238, %v230
      %v241 = vadd.f32 %v190, %v239
      %v242 = vadd.f32 %v191, %v240
      %s243 = sld [smem:[#allocation2 + $0x10]]
      %v244 = vstv %s243
      %v245 = vmul.f32 %v244, %v229
      %v246 = vmul.f32 %v244, %v230
      %v247 = vadd.f32 %v196, %v245
      %v248 = vadd.f32 %v197, %v246
      %s249 = sld [smem:[#allocation2 + $0x11]]
      %v250 = vstv %s249
      %v251 = vmul.f32 %v250, %v229
      %v252 = vmul.f32 %v250, %v230
      %v253 = vadd.f32 %v202, %v251
      %v254 = vadd.f32 %v203, %v252
      %s255 = sld [smem:[#allocation2 + $0x12]]
      %v256 = vstv %s255
      %v257 = vmul.f32 %v256, %v229
      %v258 = vmul.f32 %v256, %v230
      %v259 = vadd.f32 %v208, %v257
      %v260 = vadd.f32 %v209, %v258
      %s261 = sld [smem:[#allocation2 + $0x13]]
      %v262 = vstv %s261
      %v263 = vmul.f32 %v262, %v229
      %v264 = vmul.f32 %v262, %v230
      %v265 = vadd.f32 %v214, %v263
      %v266 = vadd.f32 %v215, %v264
      %s267 = sld [smem:[#allocation2 + $0x14]]
      %v268 = vstv %s267
      %v269 = vmul.f32 %v268, %v229
      %v270 = vmul.f32 %v268, %v230
      %v271 = vadd.f32 %v220, %v269
      %v272 = vadd.f32 %v221, %v270
      %s273 = sld [smem:[#allocation2 + $0x15]]
      %v274 = vstv %s273
      %v275 = vmul.f32 %v274, %v93
      %v276 = vmul.f32 %v274, %v100
      %v277 = vadd.f32 %v235, %v275
      %v278 = vadd.f32 %v236, %v276
      %s279 = sld [smem:[#allocation2 + $0x16]]
      %v280 = vstv %s279
      %v281 = vmul.f32 %v280, %v93
      %v282 = vmul.f32 %v280, %v100
      %v283 = vadd.f32 %v241, %v281
      %v284 = vadd.f32 %v242, %v282
      %s285 = sld [smem:[#allocation2 + $0x17]]
      %v286 = vstv %s285
      %v287 = vmul.f32 %v286, %v93
      %v288 = vmul.f32 %v286, %v100
      %v289 = vadd.f32 %v247, %v287
      %v290 = vadd.f32 %v248, %v288
      %s291 = sld [smem:[#allocation2 + $0x18]]
      %v292 = vstv %s291
      %v293 = vmul.f32 %v292, %v93
      %v294 = vmul.f32 %v292, %v100
      %v295 = vadd.f32 %v253, %v293
      %v296 = vadd.f32 %v254, %v294
      %s297 = sld [smem:[#allocation2 + $0x19]]
      %v298 = vstv %s297
      %v299 = vmul.f32 %v298, %v93
      %v300 = vmul.f32 %v298, %v100
      %v301 = vadd.f32 %v259, %v299
      %v302 = vadd.f32 %v260, %v300
      %s303 = sld [smem:[#allocation2 + $0x1a]]
      %v304 = vstv %s303
      %v305 = vmul.f32 %v304, %v93
      %v306 = vmul.f32 %v304, %v100
      %v307 = vadd.f32 %v265, %v305
      %v308 = vadd.f32 %v266, %v306
      %s309 = sld [smem:[#allocation2 + $0x1b]]
      %v310 = vstv %s309
      %v311 = vmul.f32 %v310, %v93
      %v312 = vmul.f32 %v310, %v100
      %v313 = vadd.f32 %v271, %v311
      %v314 = vadd.f32 %v272, %v312
      %315 = vrot.lane.b32.xlu0 %v93, 112
      %v316 = vpop.permute.xlu0 %315
      %317 = vrot.lane.b32.xlu0 %v100, 112
      %v318 = vpop.permute.xlu0 %317
      %vm319 = vcmp.lt.s32.totalorder %v42, 112
      %v320 = vsel %vm319, %v316, %v318
      %v321 = vsel %vm319, %v318, %v316
      %v322 = vsel %vm58, %v320, 0.0
      %v323 = vsel %vm59, %v321, 0.0
      %s324 = sld [smem:[#allocation2 + $0x1c]]
      %v325 = vstv %s324
      %v326 = vmul.f32 %v325, %v322
      %v327 = vmul.f32 %v325, %v323
      %v328 = vadd.f32 %v277, %v326
      %v329 = vadd.f32 %v278, %v327
      %s330 = sld [smem:[#allocation2 + $0x1d]]
      %v331 = vstv %s330
      %v332 = vmul.f32 %v331, %v322
      %v333 = vmul.f32 %v331, %v323
      %v334 = vadd.f32 %v283, %v332
      %v335 = vadd.f32 %v284, %v333
      %s336 = sld [smem:[#allocation2 + $0x1e]]
      %v337 = vstv %s336
      %v338 = vmul.f32 %v337, %v322
      %v339 = vmul.f32 %v337, %v323
      %v340 = vadd.f32 %v289, %v338
      %v341 = vadd.f32 %v290, %v339
      %s342 = sld [smem:[#allocation2 + $0x1f]]
      %v343 = vstv %s342
      %v344 = vmul.f32 %v343, %v322
      %v345 = vmul.f32 %v343, %v323
      %v346 = vadd.f32 %v295, %v344
      %v347 = vadd.f32 %v296, %v345
      %s348 = sld [smem:[#allocation2 + $0x20]]
      %v349 = vstv %s348
      %v350 = vmul.f32 %v349, %v322
      %v351 = vmul.f32 %v349, %v323
      %v352 = vadd.f32 %v301, %v350
      %v353 = vadd.f32 %v302, %v351
      %s354 = sld [smem:[#allocation2 + $0x21]]
      %v355 = vstv %s354
      %v356 = vmul.f32 %v355, %v322
      %v357 = vmul.f32 %v355, %v323
      %v358 = vadd.f32 %v307, %v356
      %v359 = vadd.f32 %v308, %v357
      %s360 = sld [smem:[#allocation2 + $0x22]]
      %v361 = vstv %s360
      %v362 = vmul.f32 %v361, %v322
      %v363 = vmul.f32 %v361, %v323
      %v364 = vadd.f32 %v313, %v362
      %v365 = vadd.f32 %v314, %v363
      %366 = vrot.lane.b32.xlu0 %v93, 96
      %v367 = vpop.permute.xlu0 %366
      %368 = vrot.lane.b32.xlu0 %v100, 96
      %v369 = vpop.permute.xlu0 %368
      %vm370 = vcmp.lt.s32.totalorder %v42, 96
      %v371 = vsel %vm370, %v367, %v369
      %v372 = vsel %vm370, %v369, %v367
      %v373 = vsel %vm62, %v371, 0.0
      %v374 = vsel %vm63, %v372, 0.0
      %s375 = sld [smem:[#allocation2 + $0x23]]
      %v376 = vstv %s375
      %v377 = vmul.f32 %v376, %v373
      %v378 = vmul.f32 %v376, %v374
      %v379 = vadd.f32 %v328, %v377
      %v380 = vadd.f32 %v329, %v378
      %s381 = sld [smem:[#allocation2 + $0x24]]
      %v382 = vstv %s381
      %v383 = vmul.f32 %v382, %v373
      %v384 = vmul.f32 %v382, %v374
      %v385 = vadd.f32 %v334, %v383
      %v386 = vadd.f32 %v335, %v384
      %s387 = sld [smem:[#allocation2 + $0x25]]
      %v388 = vstv %s387
      %v389 = vmul.f32 %v388, %v373
      %v390 = vmul.f32 %v388, %v374
      %v391 = vadd.f32 %v340, %v389
      %v392 = vadd.f32 %v341, %v390
      %s393 = sld [smem:[#allocation2 + $0x26]]
      %v394 = vstv %s393
      %v395 = vmul.f32 %v394, %v373
      %v396 = vmul.f32 %v394, %v374
      %v397 = vadd.f32 %v346, %v395
      %v398 = vadd.f32 %v347, %v396
      %s399 = sld [smem:[#allocation2 + $0x27]]
      %v400 = vstv %s399
      %v401 = vmul.f32 %v400, %v373
      %v402 = vmul.f32 %v400, %v374
      %v403 = vadd.f32 %v352, %v401
      %v404 = vadd.f32 %v353, %v402
      %s405 = sld [smem:[#allocation2 + $0x28]]
      %v406 = vstv %s405
      %v407 = vmul.f32 %v406, %v373
      %v408 = vmul.f32 %v406, %v374
      %v409 = vadd.f32 %v358, %v407
      %v410 = vadd.f32 %v359, %v408
      %s411 = sld [smem:[#allocation2 + $0x29]]
      %v412 = vstv %s411
      %v413 = vmul.f32 %v412, %v373
      %v414 = vmul.f32 %v412, %v374
      %v415 = vadd.f32 %v364, %v413
      %v416 = vadd.f32 %v365, %v414
      %417 = vrot.lane.b32.xlu0 %v93, 80
      %v418 = vpop.permute.xlu0 %417
      %419 = vrot.lane.b32.xlu0 %v100, 80
      %v420 = vpop.permute.xlu0 %419
      %vm421 = vcmp.lt.s32.totalorder %v42, 80
      %v422 = vsel %vm421, %v418, %v420
      %v423 = vsel %vm421, %v420, %v418
      %v424 = vsel %vm66, %v422, 0.0
      %v425 = vsel %vm67, %v423, 0.0
      %s426 = sld [smem:[#allocation2 + $0x2a]]
      %v427 = vstv %s426
      %v428 = vmul.f32 %v427, %v424
      %v429 = vmul.f32 %v427, %v425
      %v430 = vadd.f32 %v379, %v428
      %v431 = vadd.f32 %v380, %v429
      %s432 = sld [smem:[#allocation2 + $0x2b]]
      %v433 = vstv %s432
      %v434 = vmul.f32 %v433, %v424
      %v435 = vmul.f32 %v433, %v425
      %v436 = vadd.f32 %v385, %v434
      %v437 = vadd.f32 %v386, %v435
      %s438 = sld [smem:[#allocation2 + $0x2c]]
      %v439 = vstv %s438
      %v440 = vmul.f32 %v439, %v424
      %v441 = vmul.f32 %v439, %v425
      %v442 = vadd.f32 %v391, %v440
      %v443 = vadd.f32 %v392, %v441
      %s444 = sld [smem:[#allocation2 + $0x2d]]
      %v445 = vstv %s444
      %v446 = vmul.f32 %v445, %v424
      %v447 = vmul.f32 %v445, %v425
      %v448 = vadd.f32 %v397, %v446
      %v449 = vadd.f32 %v398, %v447
      %s450 = sld [smem:[#allocation2 + $0x2e]]
      %v451 = vstv %s450
      %v452 = vmul.f32 %v451, %v424
      %v453 = vmul.f32 %v451, %v425
      %v454 = vadd.f32 %v403, %v452
      %v455 = vadd.f32 %v404, %v453
      %s456 = sld [smem:[#allocation2 + $0x2f]]
      %v457 = vstv %s456
      %v458 = vmul.f32 %v457, %v424
      %v459 = vmul.f32 %v457, %v425
      %v460 = vadd.f32 %v409, %v458
      %v461 = vadd.f32 %v410, %v459
      %s462 = sld [smem:[#allocation2 + $0x30]]
      %v463 = vstv %s462
      %v464 = vmul.f32 %v463, %v424
      %v465 = vmul.f32 %v463, %v425
      %v466 = vadd.f32 %v415, %v464
      %v467 = vadd.f32 %v416, %v465
      %468 = vrot.lane.b32.xlu0 %v112, 48
      %v469 = vpop.permute.xlu0 %468
      %470 = vrot.lane.b32.xlu0 %v119, 48
      %v471 = vpop.permute.xlu0 %470
      %v472 = vsel %vm124, %v469, %v471
      %v473 = vsel %vm124, %v471, %v469
      %v474 = vsel %vm46, %v473, 0.0
      %v475 = vsel %vm47, %v472, 0.0
      %s476 = sld [smem:[#allocation2 + $0x31]]
      %v477 = vstv %s476
      %v478 = vmul.f32 %v477, %v474
      %v479 = vmul.f32 %v477, %v475
      %v480 = vadd.f32 %v430, %v478
      %v481 = vadd.f32 %v431, %v479
      %s482 = sld [smem:[#allocation2 + $0x32]]
      %v483 = vstv %s482
      %v484 = vmul.f32 %v483, %v474
      %v485 = vmul.f32 %v483, %v475
      %v486 = vadd.f32 %v436, %v484
      %v487 = vadd.f32 %v437, %v485
      %s488 = sld [smem:[#allocation2 + $0x33]]
      %v489 = vstv %s488
      %v490 = vmul.f32 %v489, %v474
      %v491 = vmul.f32 %v489, %v475
      %v492 = vadd.f32 %v442, %v490
      %v493 = vadd.f32 %v443, %v491
      %s494 = sld [smem:[#allocation2 + $0x34]]
      %v495 = vstv %s494
      %v496 = vmul.f32 %v495, %v474
      %v497 = vmul.f32 %v495, %v475
      %v498 = vadd.f32 %v448, %v496
      %v499 = vadd.f32 %v449, %v497
      %s500 = sld [smem:[#allocation2 + $0x35]]
      %v501 = vstv %s500
      %v502 = vmul.f32 %v501, %v474
      %v503 = vmul.f32 %v501, %v475
      %v504 = vadd.f32 %v454, %v502
      %v505 = vadd.f32 %v455, %v503
      %s506 = sld [smem:[#allocation2 + $0x36]]
      %v507 = vstv %s506
      %v508 = vmul.f32 %v507, %v474
      %v509 = vmul.f32 %v507, %v475
      %v510 = vadd.f32 %v460, %v508
      %v511 = vadd.f32 %v461, %v509
      %s512 = sld [smem:[#allocation2 + $0x37]]
      %v513 = vstv %s512
      %v514 = vmul.f32 %v513, %v474
      %v515 = vmul.f32 %v513, %v475
      %v516 = vadd.f32 %v466, %v514
      %v517 = vadd.f32 %v467, %v515
      %518 = vrot.lane.b32.xlu0 %v112, 32
      %v519 = vpop.permute.xlu0 %518
      %520 = vrot.lane.b32.xlu0 %v119, 32
      %v521 = vpop.permute.xlu0 %520
      %v522 = vsel %vm175, %v519, %v521
      %v523 = vsel %vm175, %v521, %v519
      %v524 = vsel %vm50, %v523, 0.0
      %v525 = vsel %vm51, %v522, 0.0
      %s526 = sld [smem:[#allocation2 + $0x38]]
      %v527 = vstv %s526
      %v528 = vmul.f32 %v527, %v524
      %v529 = vmul.f32 %v527, %v525
      %v530 = vadd.f32 %v480, %v528
      %v531 = vadd.f32 %v481, %v529
      %s532 = sld [smem:[#allocation2 + $0x39]]
      %v533 = vstv %s532
      %v534 = vmul.f32 %v533, %v524
      %v535 = vmul.f32 %v533, %v525
      %v536 = vadd.f32 %v486, %v534
      %v537 = vadd.f32 %v487, %v535
      %s538 = sld [smem:[#allocation2 + $0x3a]]
      %v539 = vstv %s538
      %v540 = vmul.f32 %v539, %v524
      %v541 = vmul.f32 %v539, %v525
      %v542 = vadd.f32 %v492, %v540
      %v543 = vadd.f32 %v493, %v541
      %s544 = sld [smem:[#allocation2 + $0x3b]]
      %v545 = vstv %s544
      %v546 = vmul.f32 %v545, %v524
      %v547 = vmul.f32 %v545, %v525
      %v548 = vadd.f32 %v498, %v546
      %v549 = vadd.f32 %v499, %v547
      %s550 = sld [smem:[#allocation2 + $0x3c]]
      %v551 = vstv %s550
      %v552 = vmul.f32 %v551, %v524
      %v553 = vmul.f32 %v551, %v525
      %v554 = vadd.f32 %v504, %v552
      %v555 = vadd.f32 %v505, %v553
      %s556 = sld [smem:[#allocation2 + $0x3d]]
      %v557 = vstv %s556
      %v558 = vmul.f32 %v557, %v524
      %v559 = vmul.f32 %v557, %v525
      %v560 = vadd.f32 %v510, %v558
      %v561 = vadd.f32 %v511, %v559
      %s562 = sld [smem:[#allocation2 + $0x3e]]
      %v563 = vstv %s562
      %v564 = vmul.f32 %v563, %v524
      %v565 = vmul.f32 %v563, %v525
      %v566 = vadd.f32 %v516, %v564
      %v567 = vadd.f32 %v517, %v565
      %568 = vrot.lane.b32.xlu0 %v112, 16
      %v569 = vpop.permute.xlu0 %568
      %570 = vrot.lane.b32.xlu0 %v119, 16
      %v571 = vpop.permute.xlu0 %570
      %v572 = vsel %vm226, %v569, %v571
      %v573 = vsel %vm226, %v571, %v569
      %v574 = vsel %vm54, %v573, 0.0
      %v575 = vsel %vm55, %v572, 0.0
      %s576 = sld [smem:[#allocation2 + $0x3f]]
      %v577 = vstv %s576
      %v578 = vmul.f32 %v577, %v574
      %v579 = vmul.f32 %v577, %v575
      %v580 = vadd.f32 %v530, %v578
      %v581 = vadd.f32 %v531, %v579
      %s582 = sld [smem:[#allocation2 + $0x40]]
      %v583 = vstv %s582
      %v584 = vmul.f32 %v583, %v574
      %v585 = vmul.f32 %v583, %v575
      %v586 = vadd.f32 %v536, %v584
      %v587 = vadd.f32 %v537, %v585
      %s588 = sld [smem:[#allocation2 + $0x41]]
      %v589 = vstv %s588
      %v590 = vmul.f32 %v589, %v574
      %v591 = vmul.f32 %v589, %v575
      %v592 = vadd.f32 %v542, %v590
      %v593 = vadd.f32 %v543, %v591
      %s594 = sld [smem:[#allocation2 + $0x42]]
      %v595 = vstv %s594
      %v596 = vmul.f32 %v595, %v574
      %v597 = vmul.f32 %v595, %v575
      %v598 = vadd.f32 %v548, %v596
      %v599 = vadd.f32 %v549, %v597
      %s600 = sld [smem:[#allocation2 + $0x43]]
      %v601 = vstv %s600
      %v602 = vmul.f32 %v601, %v574
      %v603 = vmul.f32 %v601, %v575
      %v604 = vadd.f32 %v554, %v602
      %v605 = vadd.f32 %v555, %v603
      %s606 = sld [smem:[#allocation2 + $0x44]]
      %v607 = vstv %s606
      %v608 = vmul.f32 %v607, %v574
      %v609 = vmul.f32 %v607, %v575
      %v610 = vadd.f32 %v560, %v608
      %v611 = vadd.f32 %v561, %v609
      %s612 = sld [smem:[#allocation2 + $0x45]]
      %v613 = vstv %s612
      %v614 = vmul.f32 %v613, %v574
      %v615 = vmul.f32 %v613, %v575
      %v616 = vadd.f32 %v566, %v614
      %v617 = vadd.f32 %v567, %v615
      %s618 = sld [smem:[#allocation2 + $0x46]]
      %v619 = vstv %s618
      %v620 = vmul.f32 %v619, %v112
      %v621 = vmul.f32 %v619, %v119
      %v622 = vadd.f32 %v580, %v620
      %v623 = vadd.f32 %v581, %v621
      %s624 = sld [smem:[#allocation2 + $0x47]]
      %v625 = vstv %s624
      %v626 = vmul.f32 %v625, %v112
      %v627 = vmul.f32 %v625, %v119
      %v628 = vadd.f32 %v586, %v626
      %v629 = vadd.f32 %v587, %v627
      %s630 = sld [smem:[#allocation2 + $0x48]]
      %v631 = vstv %s630
      %v632 = vmul.f32 %v631, %v112
      %v633 = vmul.f32 %v631, %v119
      %v634 = vadd.f32 %v592, %v632
      %v635 = vadd.f32 %v593, %v633
      %s636 = sld [smem:[#allocation2 + $0x49]]
      %v637 = vstv %s636
      %v638 = vmul.f32 %v637, %v112
      %v639 = vmul.f32 %v637, %v119
      %v640 = vadd.f32 %v598, %v638
      %v641 = vadd.f32 %v599, %v639
      %s642 = sld [smem:[#allocation2 + $0x4a]]
      %v643 = vstv %s642
      %v644 = vmul.f32 %v643, %v112
      %v645 = vmul.f32 %v643, %v119
      %v646 = vadd.f32 %v604, %v644
      %v647 = vadd.f32 %v605, %v645
      %s648 = sld [smem:[#allocation2 + $0x4b]]
      %v649 = vstv %s648
      %v650 = vmul.f32 %v649, %v112
      %v651 = vmul.f32 %v649, %v119
      %v652 = vadd.f32 %v610, %v650
      %v653 = vadd.f32 %v611, %v651
      %s654 = sld [smem:[#allocation2 + $0x4c]]
      %v655 = vstv %s654
      %v656 = vmul.f32 %v655, %v112
      %v657 = vmul.f32 %v655, %v119
      %v658 = vadd.f32 %v616, %v656
      %v659 = vadd.f32 %v617, %v657
      %660 = vrot.lane.b32.xlu0 %v112, 112
      %v661 = vpop.permute.xlu0 %660
      %662 = vrot.lane.b32.xlu0 %v119, 112
      %v663 = vpop.permute.xlu0 %662
      %v664 = vsel %vm319, %v661, %v663
      %v665 = vsel %vm319, %v663, %v661
      %v666 = vsel %vm58, %v664, 0.0
      %v667 = vsel %vm59, %v665, 0.0
      %s668 = sld [smem:[#allocation2 + $0x4d]]
      %v669 = vstv %s668
      %v670 = vmul.f32 %v669, %v666
      %v671 = vmul.f32 %v669, %v667
      %v672 = vadd.f32 %v622, %v670
      %v673 = vadd.f32 %v623, %v671
      %s674 = sld [smem:[#allocation2 + $0x4e]]
      %v675 = vstv %s674
      %v676 = vmul.f32 %v675, %v666
      %v677 = vmul.f32 %v675, %v667
      %v678 = vadd.f32 %v628, %v676
      %v679 = vadd.f32 %v629, %v677
      %s680 = sld [smem:[#allocation2 + $0x4f]]
      %v681 = vstv %s680
      %v682 = vmul.f32 %v681, %v666
      %v683 = vmul.f32 %v681, %v667
      %v684 = vadd.f32 %v634, %v682
      %v685 = vadd.f32 %v635, %v683
      %s686 = sld [smem:[#allocation2 + $0x50]]
      %v687 = vstv %s686
      %v688 = vmul.f32 %v687, %v666
      %v689 = vmul.f32 %v687, %v667
      %v690 = vadd.f32 %v640, %v688
      %v691 = vadd.f32 %v641, %v689
      %s692 = sld [smem:[#allocation2 + $0x51]]
      %v693 = vstv %s692
      %v694 = vmul.f32 %v693, %v666
      %v695 = vmul.f32 %v693, %v667
      %v696 = vadd.f32 %v646, %v694
      %v697 = vadd.f32 %v647, %v695
      %s698 = sld [smem:[#allocation2 + $0x52]]
      %v699 = vstv %s698
      %v700 = vmul.f32 %v699, %v666
      %v701 = vmul.f32 %v699, %v667
      %v702 = vadd.f32 %v652, %v700
      %v703 = vadd.f32 %v653, %v701
      %s704 = sld [smem:[#allocation2 + $0x53]]
      %v705 = vstv %s704
      %v706 = vmul.f32 %v705, %v666
      %v707 = vmul.f32 %v705, %v667
      %v708 = vadd.f32 %v658, %v706
      %v709 = vadd.f32 %v659, %v707
      %710 = vrot.lane.b32.xlu0 %v112, 96
      %v711 = vpop.permute.xlu0 %710
      %712 = vrot.lane.b32.xlu0 %v119, 96
      %v713 = vpop.permute.xlu0 %712
      %v714 = vsel %vm370, %v711, %v713
      %v715 = vsel %vm370, %v713, %v711
      %v716 = vsel %vm62, %v714, 0.0
      %v717 = vsel %vm63, %v715, 0.0
      %s718 = sld [smem:[#allocation2 + $0x54]]
      %v719 = vstv %s718
      %v720 = vmul.f32 %v719, %v716
      %v721 = vmul.f32 %v719, %v717
      %v722 = vadd.f32 %v672, %v720
      %v723 = vadd.f32 %v673, %v721
      %s724 = sld [smem:[#allocation2 + $0x55]]
      %v725 = vstv %s724
      %v726 = vmul.f32 %v725, %v716
      %v727 = vmul.f32 %v725, %v717
      %v728 = vadd.f32 %v678, %v726
      %v729 = vadd.f32 %v679, %v727
      %s730 = sld [smem:[#allocation2 + $0x56]]
      %v731 = vstv %s730
      %v732 = vmul.f32 %v731, %v716
      %v733 = vmul.f32 %v731, %v717
      %v734 = vadd.f32 %v684, %v732
      %v735 = vadd.f32 %v685, %v733
      %s736 = sld [smem:[#allocation2 + $0x57]]
      %v737 = vstv %s736
      %v738 = vmul.f32 %v737, %v716
      %v739 = vmul.f32 %v737, %v717
      %v740 = vadd.f32 %v690, %v738
      %v741 = vadd.f32 %v691, %v739
      %s742 = sld [smem:[#allocation2 + $0x58]]
      %v743 = vstv %s742
      %v744 = vmul.f32 %v743, %v716
      %v745 = vmul.f32 %v743, %v717
      %v746 = vadd.f32 %v696, %v744
      %v747 = vadd.f32 %v697, %v745
      %s748 = sld [smem:[#allocation2 + $0x59]]
      %v749 = vstv %s748
      %v750 = vmul.f32 %v749, %v716
      %v751 = vmul.f32 %v749, %v717
      %v752 = vadd.f32 %v702, %v750
      %v753 = vadd.f32 %v703, %v751
      %s754 = sld [smem:[#allocation2 + $0x5a]]
      %v755 = vstv %s754
      %v756 = vmul.f32 %v755, %v716
      %v757 = vmul.f32 %v755, %v717
      %v758 = vadd.f32 %v708, %v756
      %v759 = vadd.f32 %v709, %v757
      %760 = vrot.lane.b32.xlu0 %v112, 80
      %v761 = vpop.permute.xlu0 %760
      %762 = vrot.lane.b32.xlu0 %v119, 80
      %v763 = vpop.permute.xlu0 %762
      %v764 = vsel %vm421, %v761, %v763
      %v765 = vsel %vm421, %v763, %v761
      %v766 = vsel %vm66, %v764, 0.0
      %v767 = vsel %vm67, %v765, 0.0
      %s768 = sld [smem:[#allocation2 + $0x5b]]
      %v769 = vstv %s768
      %v770 = vmul.f32 %v769, %v766
      %v771 = vmul.f32 %v769, %v767
      %v772 = vadd.f32 %v722, %v770
      %v773 = vadd.f32 %v723, %v771
      %s774 = sld [smem:[#allocation2 + $0x5c]]
      %v775 = vstv %s774
      %v776 = vmul.f32 %v775, %v766
      %v777 = vmul.f32 %v775, %v767
      %v778 = vadd.f32 %v728, %v776
      %v779 = vadd.f32 %v729, %v777
      %s780 = sld [smem:[#allocation2 + $0x5d]]
      %v781 = vstv %s780
      %v782 = vmul.f32 %v781, %v766
      %v783 = vmul.f32 %v781, %v767
      %v784 = vadd.f32 %v734, %v782
      %v785 = vadd.f32 %v735, %v783
      %s786 = sld [smem:[#allocation2 + $0x5e]]
      %v787 = vstv %s786
      %v788 = vmul.f32 %v787, %v766
      %v789 = vmul.f32 %v787, %v767
      %v790 = vadd.f32 %v740, %v788
      %v791 = vadd.f32 %v741, %v789
      %s792 = sld [smem:[#allocation2 + $0x5f]]
      %v793 = vstv %s792
      %v794 = vmul.f32 %v793, %v766
      %v795 = vmul.f32 %v793, %v767
      %v796 = vadd.f32 %v746, %v794
      %v797 = vadd.f32 %v747, %v795
      %s798 = sld [smem:[#allocation2 + $0x60]]
      %v799 = vstv %s798
      %v800 = vmul.f32 %v799, %v766
      %v801 = vmul.f32 %v799, %v767
      %v802 = vadd.f32 %v752, %v800
      %v803 = vadd.f32 %v753, %v801
      %s804 = sld [smem:[#allocation2 + $0x61]]
      %v805 = vstv %s804
      %v806 = vmul.f32 %v805, %v766
      %v807 = vmul.f32 %v805, %v767
      %v808 = vadd.f32 %v758, %v806
      %v809 = vadd.f32 %v759, %v807
      %810 = vrot.lane.b32.xlu0 %v772, 3
      %v811 = vpop.permute.xlu0 %810
      %812 = vrot.lane.b32.xlu0 %v773, 3
      %v813 = vpop.permute.xlu0 %812
      %vm814 = vcmp.lt.s32.totalorder %v42, 3
      %v815 = vsel %vm814, %v811, %v813
      %v816 = vsel %vm814, %v813, %v811
      %v817 = vsel %vm48, %v816, 0.0
      %v818 = vsel %vm49, %v815, 0.0
      %v819 = vadd.f32 %v790, %v817
      %v820 = vadd.f32 %v791, %v818
      %821 = vrot.lane.b32.xlu0 %v778, 2
      %v822 = vpop.permute.xlu0 %821
      %823 = vrot.lane.b32.xlu0 %v779, 2
      %v824 = vpop.permute.xlu0 %823
      %vm825 = vcmp.lt.s32.totalorder %v42, 2
      %v826 = vsel %vm825, %v822, %v824
      %v827 = vsel %vm825, %v824, %v822
      %v828 = vsel %vm52, %v827, 0.0
      %v829 = vsel %vm53, %v826, 0.0
      %v830 = vadd.f32 %v819, %v828
      %v831 = vadd.f32 %v820, %v829
      %832 = vrot.lane.b32.xlu0 %v784, 1
      %v833 = vpop.permute.xlu0 %832
      %834 = vrot.lane.b32.xlu0 %v785, 1
      %v835 = vpop.permute.xlu0 %834
      %vm836 = vcmp.lt.s32.totalorder %v42, 1
      %v837 = vsel %vm836, %v833, %v835
      %v838 = vsel %vm836, %v835, %v833
      %v839 = vsel %vm56, %v838, 0.0
      %v840 = vsel %vm57, %v837, 0.0
      %v841 = vadd.f32 %v830, %v839
      %v842 = vadd.f32 %v831, %v840
      %843 = vrot.lane.b32.xlu0 %v796, 127
      %v844 = vpop.permute.xlu0 %843
      %845 = vrot.lane.b32.xlu0 %v797, 127
      %v846 = vpop.permute.xlu0 %845
      %vm847 = vcmp.lt.s32.totalorder %v42, 127
      %v848 = vsel %vm847, %v844, %v846
      %v849 = vsel %vm847, %v846, %v844
      %v850 = vsel %vm60, %v848, 0.0
      %v851 = vsel %vm61, %v849, 0.0
      %v852 = vadd.f32 %v841, %v850
      %v853 = vadd.f32 %v842, %v851
      %854 = vrot.lane.b32.xlu0 %v802, 126
      %v855 = vpop.permute.xlu0 %854
      %856 = vrot.lane.b32.xlu0 %v803, 126
      %v857 = vpop.permute.xlu0 %856
      %vm858 = vcmp.lt.s32.totalorder %v42, 126
      %v859 = vsel %vm858, %v855, %v857
      %v860 = vsel %vm858, %v857, %v855
      %v861 = vsel %vm64, %v859, 0.0
      %v862 = vsel %vm65, %v860, 0.0
      %v863 = vadd.f32 %v852, %v861
      %v864 = vadd.f32 %v853, %v862
      %865 = vrot.lane.b32.xlu0 %v808, 125
      %v866 = vpop.permute.xlu0 %865
      %867 = vrot.lane.b32.xlu0 %v809, 125
      %v868 = vpop.permute.xlu0 %867
      %vm869 = vcmp.lt.s32.totalorder %v42, 125
      %v870 = vsel %vm869, %v866, %v868
      %v871 = vsel %vm869, %v868, %v866
      %v872 = vsel %vm68, %v870, 0.0
      %v873 = vsel %vm69, %v871, 0.0
      %v874 = vadd.f32 %v863, %v872
      %v875 = vadd.f32 %v864, %v873
      %s876 = sld [smem:[#allocation2 + $0x62]]
      %v877 = vstv %s876
      %v878 = vadd.f32 %v874, %v877
      %v879 = vadd.f32 %v875, %v877
      %v880 = vxor.u32 %v878, 2147483648
      %v881 = vxor.u32 %v879, 2147483648
      %v882 = vmul.f32 %v880, 1.442695
      %v883 = vpow.pop %v882
      %v884 = vmul.f32 %v881, 1.442695
      %v885 = vpow.pop %v884
      %v886 = vadd.f32 %v883, 1.0
      %v887 = vadd.f32 %v885, 1.0
      %v888 = vrcp.pop %v886
      %v889 = vmul.f32 %v886, %v888
      %v890 = vsub.f32 1.0, %v889
      %v891 = vmul.f32 %v888, %v890
      %v892 = vadd.f32 %v888, %v891
      %vm893 = vweird.f32 %v886
      %vm894 = vweird.f32 %v888
      %vm895 = vmor %vm893, %vm894
      %v896 = vsel %vm895, %v888, %v892
      %v897 = vand.u32 2147483647, %v886
      %vm898 = vcmp.eq.f32.partialorder %v897, 8.507059e+37
      %v899 = vand.u32 %v886, 2147483648
      %v900 = vor.u32 1.1754944e-38, %v899
      %v901 = vsel %vm898, %v900, %v896
      %v902 = vmul.f32 1.0, %v901
      %v903 = vrcp.pop %v887
      %v904 = vmul.f32 %v887, %v903
      %v905 = vsub.f32 1.0, %v904
      %v906 = vmul.f32 %v903, %v905
      %v907 = vadd.f32 %v903, %v906
      %vm908 = vweird.f32 %v887
      %vm909 = vweird.f32 %v903
      %vm910 = vmor %vm908, %vm909
      %v911 = vsel %vm910, %v903, %v907
      %v912 = vand.u32 2147483647, %v887
      %vm913 = vcmp.eq.f32.partialorder %v912, 8.507059e+37
      %v914 = vand.u32 %v887, 2147483648
      %v915 = vor.u32 1.1754944e-38, %v914
      %v916 = vsel %vm913, %v915, %v911
      %v917 = vmul.f32 1.0, %v916
      %v918 = vperm.slane %v902, 0
      %v919 = vperm.slane %v917, 0
      %s920 = smul.u32 0, 2
      %s921 = sadd.s32 %s920, %s76
      %s922 = smul.addr %s921, 4
      %s923 = scalar_lea.vmem [#allocation6], %s922
      %v924 = vld [vmem:[%s923] sm:$0xff]
      %v927 = vrot.slane %v919, 4
      %v928 = vsel %vm86, %v918, %v927
      %v930 = vmul.f32 %v924, %v928
      %s931 = smul.addr %s921, 4
      %s932 = scalar_lea.vmem [#allocation7], %s931
      %933 = vst [vmem:[%s932] sm:$0xff] %v930
    $region22: #{tpu_custom_call.1} parent=1 // loop_footer
      %s75 = sadd.s32 1, %s71
    $region23: #{tpu_custom_call.1} parent=1 // loop_footer_branch
      %70 = sbr.rel target = $region19
    $region24: #{tpu_custom_call.1} parent=1 // loop_exit
      _
    // Predicated region
    $region25: #{tpu_custom_call.1} parent=1 // pred_check
      _
    $region26: #{tpu_custom_call.1} parent=1 // pred_check_branch
      %935 = sbr.rel (0) target = $region28
    $region27: #{tpu_custom_call.1} parent=1 // pred_region
      %937 = vsyncadd [#allocation4], 0
      %s938 = sshll.u32 [#allocation7], 4
      %s939 = int_to_ptr.vmem [resolvable:$true] %s938
      %s940 = sshll.u32 %s2, 4
      %s941 = int_to_ptr.hbm [resolvable:$true] %s940
      %946 = dma.vmem_to_hbm [thread:$0]  %s939, 256, %s941, [#allocation4], 128, 128, 8
    $region28: #{tpu_custom_call.1} parent=1 // pred_fallthru
      _
    // Predicated region
    $region29: #{tpu_custom_call.1} parent=1 // pred_check
      _
    $region30: #{tpu_custom_call.1} parent=1 // pred_check_branch
      %948 = sbr.rel (0) target = $region32
    $region31: #{tpu_custom_call.1} parent=1 // pred_region
      %950 = dma.done [#allocation4], 256
    $region32: #{tpu_custom_call.1} parent=1 // pred_fallthru
      _
    %951 = vsyncpa [#allocation3], 1
    %952 = vsyncpa [#allocation4], 1
    %953 = vsyncpa [#allocation5], 1

</llo_original>
